<compile_context>
chip_gen: v7x
topology: tpu7x:2x2x1
jax: 0.10.0
libtpu: 0.0.40
codegen_flags: <defaults>
</compile_context>

<pallas_src>
import functools

import jax
import jax.numpy as jnp
from jax import lax
from jax.experimental import pallas as pl
from jax.experimental.pallas import tpu as pltpu


def _mamba_block_kernel(x_ref, wzx_ref, wbcdt_ref, wout_ref, rms1_ref, rms2_ref,
                        a_ref, dfull_ref, o_ref, scan_ref,
                        *, Bb, L, dim, H, N, nh, hd, eps):
    xb = x_ref[...]                                            # (Bb*L, dim) f32

    # ---- block pre-norm: RMSNorm over dim (kept in f32) ----
    inv = lax.rsqrt(jnp.mean(xb * xb, axis=-1, keepdims=True) + eps)
    xn = xb * inv * rms1_ref[...]                              # (Bb*L, dim)
    xn_bf = xn.astype(jnp.bfloat16)

    # ---- in_proj, split for lane alignment ----
    # z|x block (2H lanes, 128-aligned): bf16 MXU operands, f32 accumulation.
    zx = jnp.dot(xn_bf, wzx_ref[...], preferred_element_type=jnp.float32)    # (Bb*L, 2H)
    # B|C|dt block (2N+nh lanes): tiny; kept f32 since dt feeds exp-amplified decay.
    bcdt = jnp.dot(xn, wbcdt_ref[...], preferred_element_type=jnp.float32)   # (Bb*L, 2N+nh)

    z = zx[:, :H]                                              # gate
    xs = zx[:, H:]                                             # ssm input
    Bm = bcdt[:, :N]                                           # (rows, N), n_groups=1
    Cm = bcdt[:, N:2 * N]                                      # (rows, N)
    dtr = bcdt[:, 2 * N:2 * N + nh]                            # (rows, nh)

    # dt = softplus(dt_raw)   (dt_bias=None, dt_limit=(0, inf) => no clamp)
    dt = jnp.maximum(dtr, 0.0) + jnp.log(1.0 + jnp.exp(-jnp.abs(dtr)))       # (rows, nh)

    # causal mask, shared by all sequences / heads
    t_idx = lax.broadcasted_iota(jnp.int32, (L, L), 0)
    s_idx = lax.broadcasted_iota(jnp.int32, (L, L), 1)
    causal = t_idx >= s_idx

    # Zero fill the low half of the scan buffer once; only rows [L, 2L) are
    # rewritten below.  It is used to build "shift down by k with zero fill".
    scan_ref[pl.ds(0, L), :] = jnp.zeros((L, nh), jnp.float32)

    y_rows = []
    for b in range(Bb):                                        # Bb is small & static
        r0 = b * L
        xs_b = xs[r0:r0 + L, :]                                # (L, H)
        dt_b = dt[r0:r0 + L, :]                                # (L, nh)
        Bm_b = Bm[r0:r0 + L, :]
        Cm_b = Cm[r0:r0 + L, :]

        # Inclusive cumsum of dt over time: log2(L) shift-adds through the
        # zero-padded VMEM buffer (replaces the old (L,L)@(L,nh) MXU matmul).
        dtc = dt_b
        amt = 1
        while amt < L:
            scan_ref[pl.ds(L, L), :] = dtc
            dtc = dtc + scan_ref[pl.ds(L - amt, L), :]
            amt *= 2
        dtcT = dtc.T                                           # (nh, L): one transpose/seq

        # C_t . B_s, shared across heads (n_groups == 1); bf16 MXU, f32 acc.
        CB = lax.dot_general(
            Cm_b.astype(jnp.bfloat16), Bm_b.astype(jnp.bfloat16),
            (((1,), (1,)), ((), ())), preferred_element_type=jnp.float32)    # (L, L)

        # ---- SSD quadratic form per head ----
        # y[t] = sum_{s<=t} (C_t.B_s) * exp(A_h*(cumdt_t - cumdt_s)) * dt_s * x_s
        # TODO(synk): for production n_heads (32-128) convert this unrolled loop
        # into a fori_loop / batched contraction to bound vreg live ranges.
        head_cols = []
        for h in range(nh):
            a_h = a_ref[h]                                     # scalar (SMEM): -exp(A_log_h)
            seg = a_h * (dtc[:, h:h + 1] - dtcT[h:h + 1, :])   # (L, L)
            decay = jnp.exp(jnp.where(causal, seg, -1e30))     # exact 0 above diagonal
            M = (CB * decay).astype(jnp.bfloat16)
            xdt = (xs_b[:, h * hd:(h + 1) * hd] * dt_b[:, h:h + 1]).astype(jnp.bfloat16)
            head_cols.append(jnp.dot(M, xdt, preferred_element_type=jnp.float32))
        y_rows.append(jnp.concatenate(head_cols, axis=-1))     # (L, H), stays in vregs

    y = jnp.concatenate(y_rows, axis=0) if Bb > 1 else y_rows[0]   # (Bb*L, H)
    y = y + xs * dfull_ref[...]                                # + D_h * x (D pre-expanded)

    # ---- gated RMSNorm: ssm_norm(y * silu(z)) ----
    zg = z * pl.reciprocal(1.0 + jnp.exp(-z), approx=True)     # silu: EUP exp + approx recip
    yg = y * zg
    inv2 = lax.rsqrt(jnp.mean(yg * yg, axis=-1, keepdims=True) + eps)
    yn = (yg * inv2 * rms2_ref[...]).astype(jnp.bfloat16)

    # ---- out_proj + residual ----
    out = jnp.dot(yn, wout_ref[...], preferred_element_type=jnp.float32)
    o_ref[...] = xb + out


def mamba_block_forward(x, w_in, w_out, rms1_w, rms2_w, a_log, d,
                        eps=1e-5, batch_block=None):
    B, L, dim = x.shape
    H = rms2_w.shape[-1]
    nh = a_log.shape[0]
    hd = H // nh
    d_in_proj = w_in.shape[1]
    N = (d_in_proj - 2 * H - nh) // 2

    if batch_block is None:
        # Fuse rows for MXU fill but keep >=2 grid steps when possible so both
        # v7x TensorCores are fed (dimension_semantics=("parallel",)).
        batch_block = 2 if (B % 2 == 0 and B >= 4) else 1
    assert B % batch_block == 0
    R = batch_block * L

    # Host-side weight prep (free layout plumbing, done once under jit):
    #  * split in_proj so z|x land lane-aligned and B|C|dt form one packed tile
    #  * bf16 weights for the big matmuls (halves HBM->VMEM DMA + VMEM)
    #  * A = -exp(A_log) precomputed; D expanded across head_dim
    w_zx = w_in[:, :2 * H].astype(jnp.bfloat16)                # (dim, 2H)
    w_bcdt = w_in[:, 2 * H:].astype(jnp.float32)               # (dim, 2N+nh), f32
    w_out_bf = w_out.astype(jnp.bfloat16)                      # (H, dim)
    a_neg = -jnp.exp(a_log.astype(jnp.float32))                # (nh,)
    d_full = jnp.repeat(d.astype(jnp.float32), hd).reshape(1, H)

    x2 = x.reshape(B * L, dim)                                 # fuse (batch, seq) rows

    kernel = functools.partial(_mamba_block_kernel, Bb=batch_block, L=L, dim=dim,
                               H=H, N=N, nh=nh, hd=hd, eps=eps)
    out2 = pl.pallas_call(
        kernel,
        out_shape=jax.ShapeDtypeStruct((B * L, dim), jnp.float32),
        grid_spec=pltpu.PrefetchScalarGridSpec(
            num_scalar_prefetch=0,
            grid=(B // batch_block,),
            in_specs=[
                pl.BlockSpec((R, dim), lambda i: (i, 0)),              # x rows
                pl.BlockSpec((dim, 2 * H), lambda i: (0, 0)),          # W_zx (bf16)
                pl.BlockSpec((dim, 2 * N + nh), lambda i: (0, 0)),     # W_bcdt (f32)
                pl.BlockSpec((H, dim), lambda i: (0, 0)),              # W_out (bf16)
                pl.BlockSpec((1, dim), lambda i: (0, 0)),              # rms1 weight
                pl.BlockSpec((1, H), lambda i: (0, 0)),                # rms2 weight
                pl.BlockSpec(memory_space=pltpu.MemorySpace.SMEM),     # A = -exp(A_log)
                pl.BlockSpec((1, H), lambda i: (0, 0)),                # D expanded to (1, H)
            ],
            out_specs=pl.BlockSpec((R, dim), lambda i: (i, 0)),
            scratch_shapes=[pltpu.VMEM((2 * L, nh), jnp.float32)],     # cumsum shift buffer
        ),
        # TODO(synk): at production dims add a K-tiled in_proj grid axis and an
        # explicit vmem_limit_bytes budget for v7x's 64 MiB VMEM.
        compiler_params=pltpu.CompilerParams(dimension_semantics=("parallel",)),
    )(x2, w_zx, w_bcdt, w_out_bf, rms1_w, rms2_w, a_neg, d_full)
    return out2.reshape(B, L, dim)


# ---- pure-JAX reference (sequential recurrence) for correctness checking ----
def mamba_block_ref(x, w_in, w_out, rms1_w, rms2_w, a_log, d, *, nh, hd, N, eps=1e-5):
    Bsz, L, dim = x.shape
    H = nh * hd

    def rms(v, w):
        return v * lax.rsqrt(jnp.mean(v * v, -1, keepdims=True) + eps) * w

    xn = rms(x, rms1_w.reshape(dim))
    zx = jnp.einsum('bld,dk->blk', xn, w_in)
    z = zx[..., :H]
    xs = zx[..., H:2 * H]
    Bm = zx[..., 2 * H:2 * H + N]
    Cm = zx[..., 2 * H + N:2 * H + 2 * N]
    dt = jax.nn.softplus(zx[..., 2 * H + 2 * N:])              # (B, L, nh)
    A = -jnp.exp(a_log)                                        # (nh,)
    xh = xs.reshape(Bsz, L, nh, hd)

    def scan_one(xb, dtb, Bb, Cb):
        def step(state, inp):
            x_t, dt_t, B_t, C_t = inp
            dA = jnp.exp(dt_t * A)                             # (nh,)
            state = dA[:, None, None] * state \
                + (dt_t[:, None] * x_t)[:, :, None] * B_t[None, None, :]
            y_t = jnp.einsum('hpn,n->hp', state, C_t) + d[:, None] * x_t
            return state, y_t
        s0 = jnp.zeros((nh, hd, N), jnp.float32)
        _, ys = lax.scan(step, s0, (xb, dtb, Bb, Cb))
        return ys

    ys = jax.vmap(scan_one)(xh, dt, Bm, Cm)                    # (B, L, nh, hd)
    y = ys.reshape(Bsz, L, H)
    yg = y * (z * jax.nn.sigmoid(z))
    yn = rms(yg, rms2_w.reshape(H))
    return x + jnp.einsum('blh,hd->bld', yn, w_out)


if __name__ == "__main__":
    # Small hyperparameters consistent with MambaBlock / SSM __init__ semantics:
    # dim=64, multiple_of=64, n_heads=4, state_dim=32, n_groups=1, conv_size=None,
    # dt_bias=False, D_has_head_dim=False, learnable_init_states=False.
    dim = 64
    multiple_of = 64
    n_heads = 4
    state_dim = 32
    n_groups = 1

    # SSM hidden_dim derivation (hidden_dim argument = 3*dim):
    hidden_dim = int(2 * (3 * dim) / 3)
    hidden_dim = multiple_of * ((hidden_dim + multiple_of - 1) // multiple_of)  # 128
    head_dim = hidden_dim // n_heads
    d_in_proj = 2 * hidden_dim + 2 * n_groups * state_dim + n_heads

    Bsz, L = 4, 16
    key = jax.random.PRNGKey(0)
    k_x, k_in, k_out = jax.random.split(key, 3)

    x = jax.random.normal(k_x, (Bsz, L, dim), jnp.float32)
    w_in = jax.random.normal(k_in, (dim, d_in_proj), jnp.float32) * dim ** -0.5
    w_out = jax.random.normal(k_out, (hidden_dim, dim), jnp.float32) * hidden_dim ** -0.5
    rms1_w = jnp.ones((1, dim), jnp.float32)                   # RMSNorm weights (init = 1)
    rms2_w = jnp.ones((1, hidden_dim), jnp.float32)
    a_log = jnp.log(jnp.linspace(1.0, 16.0, n_heads).astype(jnp.float32))  # A ~ U[1,16], logged
    d = jnp.ones((n_heads,), jnp.float32)                      # D = 1

    y = mamba_block_forward(x, w_in, w_out, rms1_w, rms2_w, a_log, d)
    y = jax.block_until_ready(y)

    y_ref = mamba_block_ref(x, w_in, w_out, rms1_w, rms2_w, a_log, d,
                            nh=n_heads, hd=head_dim, N=state_dim)
    # Tolerance reflects the deliberate bf16 MXU operands (f32 reference);
    # dt/B/C are kept f32 so the exp()-amplified decay terms are not degraded.
    err = float(jnp.max(jnp.abs(y - y_ref)))
    assert jnp.allclose(y, y_ref, atol=5e-2, rtol=5e-2), err

    # TODO(synk): conv_size / caching / varlen (tok_idx, cu_seqlens) SSM paths and the
    # inter-chunk state carry needed for seq_len > chunk_size are not implemented here.
    print("KERNEL_OK")
</pallas_src>

<mosaic_0001>
module attributes {stable_mosaic.version = 11 : i64} {
  func.func @_mamba_block_kernel(%arg0: i32, %arg1: memref<32x64xf32, #tpu.memory_space<vmem>>, %arg2: memref<64x256xbf16, #tpu.memory_space<vmem>>, %arg3: memref<64x68xf32, #tpu.memory_space<vmem>>, %arg4: memref<128x64xbf16, #tpu.memory_space<vmem>>, %arg5: memref<1x64xf32, #tpu.memory_space<vmem>>, %arg6: memref<1x128xf32, #tpu.memory_space<vmem>>, %arg7: memref<4xf32, #tpu.memory_space<smem>>, %arg8: memref<1x128xf32, #tpu.memory_space<vmem>>, %arg9: memref<32x64xf32, #tpu.memory_space<vmem>>, %arg10: memref<32x4xf32, #tpu.memory_space<vmem>>) attributes {dimension_semantics = [#tpu.dimension_semantics<parallel>], iteration_bounds = array<i64: 2>, scalar_prefetch = 0 : i64, scratch_operands = 1 : i64, tpu.core_type = #tpu.core_type<tc>, window_params = [{transform_indices = @transform_0, window_bounds = array<i64: 32, 64>}, {pipeline_mode = #tpu.pipeline_mode<synchronous>, transform_indices = @transform_1, window_bounds = array<i64: 64, 256>}, {pipeline_mode = #tpu.pipeline_mode<synchronous>, transform_indices = @transform_2, window_bounds = array<i64: 64, 68>}, {pipeline_mode = #tpu.pipeline_mode<synchronous>, transform_indices = @transform_3, window_bounds = array<i64: 128, 64>}, {pipeline_mode = #tpu.pipeline_mode<synchronous>, transform_indices = @transform_4, window_bounds = array<i64: 1, 64>}, {pipeline_mode = #tpu.pipeline_mode<synchronous>, transform_indices = @transform_5, window_bounds = array<i64: 1, 128>}, {transform_indices = @transform_6, window_bounds = array<i64: 4>}, {pipeline_mode = #tpu.pipeline_mode<synchronous>, transform_indices = @transform_7, window_bounds = array<i64: 1, 128>}, {transform_indices = @transform_8, window_bounds = array<i64: 32, 64>}]} {
    %c0 = arith.constant 0 : index
    %c0_0 = arith.constant 0 : index
    %0 = vector.load %arg1[%c0, %c0_0] : memref<32x64xf32, #tpu.memory_space<vmem>>, vector<32x64xf32>
    %1 = arith.mulf %0, %0 : vector<32x64xf32>
    %cst = arith.constant dense<0.000000e+00> : vector<32xf32>
    %2 = vector.multi_reduction <add>, %1, %cst [1] : vector<32x64xf32> to vector<32xf32>
    %3 = vector.shape_cast %2 : vector<32xf32> to vector<32x1xf32>
    %cst_1 = arith.constant 6.400000e+01 : f32
    %4 = vector.broadcast %cst_1 : f32 to vector<32x1xf32>
    %5 = arith.divf %3, %4 : vector<32x1xf32>
    %cst_2 = arith.constant 9.99999974E-6 : f32
    %6 = vector.broadcast %cst_2 : f32 to vector<32x1xf32>
    %7 = arith.addf %5, %6 : vector<32x1xf32>
    %8 = math.rsqrt %7 : vector<32x1xf32>
    %9 = vector.broadcast %8 : vector<32x1xf32> to vector<32x64xf32>
    %10 = arith.mulf %0, %9 : vector<32x64xf32>
    %c0_3 = arith.constant 0 : index
    %c0_4 = arith.constant 0 : index
    %11 = vector.load %arg5[%c0_3, %c0_4] : memref<1x64xf32, #tpu.memory_space<vmem>>, vector<1x64xf32>
    %12 = vector.broadcast %11 : vector<1x64xf32> to vector<32x64xf32>
    %13 = arith.mulf %10, %12 : vector<32x64xf32>
    %14 = arith.truncf %13 : vector<32x64xf32> to vector<32x64xbf16>
    %c0_5 = arith.constant 0 : index
    %c0_6 = arith.constant 0 : index
    %15 = vector.load %arg2[%c0_5, %c0_6] : memref<64x256xbf16, #tpu.memory_space<vmem>>, vector<64x256xbf16>
    %cst_7 = arith.constant dense<0.000000e+00> : vector<32x256xf32>
    %16 = tpu.matmul %14, %15, %cst_7 {dimension_numbers = #tpu.dot_dimension_numbers<[1], [0], [0], [1], [0, 0, 1, 1], [], []>} : vector<32x64xbf16>, vector<64x256xbf16>, vector<32x256xf32> -> vector<32x256xf32>
    %c0_8 = arith.constant 0 : index
    %c0_9 = arith.constant 0 : index
    %17 = vector.load %arg3[%c0_8, %c0_9] : memref<64x68xf32, #tpu.memory_space<vmem>>, vector<64x68xf32>
    %cst_10 = arith.constant dense<0.000000e+00> : vector<32x68xf32>
    %18 = tpu.matmul %13, %17, %cst_10 {dimension_numbers = #tpu.dot_dimension_numbers<[1], [0], [0], [1], [0, 0, 1, 1], [], []>} : vector<32x64xf32>, vector<64x68xf32>, vector<32x68xf32> -> vector<32x68xf32>
    %19 = vector.extract_strided_slice %16 {offsets = [0, 0], sizes = [32, 128], strides = [1, 1]} : vector<32x256xf32> to vector<32x128xf32>
    %20 = vector.extract_strided_slice %16 {offsets = [0, 128], sizes = [32, 128], strides = [1, 1]} : vector<32x256xf32> to vector<32x128xf32>
    %21 = vector.extract_strided_slice %18 {offsets = [0, 0], sizes = [32, 32], strides = [1, 1]} : vector<32x68xf32> to vector<32x32xf32>
    %22 = vector.extract_strided_slice %18 {offsets = [0, 32], sizes = [32, 32], strides = [1, 1]} : vector<32x68xf32> to vector<32x32xf32>
    %23 = vector.extract_strided_slice %18 {offsets = [0, 64], sizes = [32, 4], strides = [1, 1]} : vector<32x68xf32> to vector<32x4xf32>
    %cst_11 = arith.constant 0.000000e+00 : f32
    %24 = vector.broadcast %cst_11 : f32 to vector<32x4xf32>
    %25 = arith.maximumf %23, %24 : vector<32x4xf32>
    %26 = math.absf %23 : vector<32x4xf32>
    %cst_12 = arith.constant 0.000000e+00 : f32
    %27 = vector.broadcast %cst_12 : f32 to vector<32x4xf32>
    %28 = arith.subf %27, %26 : vector<32x4xf32>
    %29 = math.exp %28 : vector<32x4xf32>
    %cst_13 = arith.constant 1.000000e+00 : f32
    %30 = vector.broadcast %cst_13 : f32 to vector<32x4xf32>
    %31 = arith.addf %30, %29 : vector<32x4xf32>
    %32 = math.log %31 : vector<32x4xf32>
    %33 = arith.addf %25, %32 : vector<32x4xf32>
    %34 = tpu.iota {dimensions = array<i32: 0>} : vector<16x16xi32>
    %35 = tpu.iota {dimensions = array<i32: 1>} : vector<16x16xi32>
    %36 = arith.cmpi sge, %34, %35 : vector<16x16xi32>
    %cst_14 = arith.constant 0.000000e+00 : f32
    %37 = vector.broadcast %cst_14 : f32 to vector<16x4xf32>
    %c0_15 = arith.constant 0 : index
    %c0_16 = arith.constant 0 : index
    %38 = vector.load %arg10[%c0_15, %c0_16] : memref<32x4xf32, #tpu.memory_space<vmem>>, vector<16x4xf32>
    tpu.vector_store %arg10[%c0_15, %c0_16], %37 {strides = array<i32>} : memref<32x4xf32, #tpu.memory_space<vmem>>, vector<16x4xf32>,
    %39 = vector.extract_strided_slice %20 {offsets = [0, 0], sizes = [16, 128], strides = [1, 1]} : vector<32x128xf32> to vector<16x128xf32>
    %40 = vector.extract_strided_slice %33 {offsets = [0, 0], sizes = [16, 4], strides = [1, 1]} : vector<32x4xf32> to vector<16x4xf32>
    %41 = vector.extract_strided_slice %21 {offsets = [0, 0], sizes = [16, 32], strides = [1, 1]} : vector<32x32xf32> to vector<16x32xf32>
    %42 = vector.extract_strided_slice %22 {offsets = [0, 0], sizes = [16, 32], strides = [1, 1]} : vector<32x32xf32> to vector<16x32xf32>
    %c16 = arith.constant 16 : index
    %c0_17 = arith.constant 0 : index
    %43 = vector.load %arg10[%c16, %c0_17] : memref<32x4xf32, #tpu.memory_space<vmem>>, vector<16x4xf32>
    tpu.vector_store %arg10[%c16, %c0_17], %40 {strides = array<i32>} : memref<32x4xf32, #tpu.memory_space<vmem>>, vector<16x4xf32>,
    %c15 = arith.constant 15 : index
    %c0_18 = arith.constant 0 : index
    %44 = vector.load %arg10[%c15, %c0_18] : memref<32x4xf32, #tpu.memory_space<vmem>>, vector<16x4xf32>
    %45 = arith.addf %40, %44 : vector<16x4xf32>
    %c16_19 = arith.constant 16 : index
    %c0_20 = arith.constant 0 : index
    %46 = vector.load %arg10[%c16_19, %c0_20] : memref<32x4xf32, #tpu.memory_space<vmem>>, vector<16x4xf32>
    tpu.vector_store %arg10[%c16_19, %c0_20], %45 {strides = array<i32>} : memref<32x4xf32, #tpu.memory_space<vmem>>, vector<16x4xf32>,
    %c14 = arith.constant 14 : index
    %c0_21 = arith.constant 0 : index
    %47 = vector.load %arg10[%c14, %c0_21] : memref<32x4xf32, #tpu.memory_space<vmem>>, vector<16x4xf32>
    %48 = arith.addf %45, %47 : vector<16x4xf32>
    %c16_22 = arith.constant 16 : index
    %c0_23 = arith.constant 0 : index
    %49 = vector.load %arg10[%c16_22, %c0_23] : memref<32x4xf32, #tpu.memory_space<vmem>>, vector<16x4xf32>
    tpu.vector_store %arg10[%c16_22, %c0_23], %48 {strides = array<i32>} : memref<32x4xf32, #tpu.memory_space<vmem>>, vector<16x4xf32>,
    %c12 = arith.constant 12 : index
    %c0_24 = arith.constant 0 : index
    %50 = vector.load %arg10[%c12, %c0_24] : memref<32x4xf32, #tpu.memory_space<vmem>>, vector<16x4xf32>
    %51 = arith.addf %48, %50 : vector<16x4xf32>
    %c16_25 = arith.constant 16 : index
    %c0_26 = arith.constant 0 : index
    %52 = vector.load %arg10[%c16_25, %c0_26] : memref<32x4xf32, #tpu.memory_space<vmem>>, vector<16x4xf32>
    tpu.vector_store %arg10[%c16_25, %c0_26], %51 {strides = array<i32>} : memref<32x4xf32, #tpu.memory_space<vmem>>, vector<16x4xf32>,
    %c8 = arith.constant 8 : index
    %c0_27 = arith.constant 0 : index
    %53 = vector.load %arg10[%c8, %c0_27] : memref<32x4xf32, #tpu.memory_space<vmem>>, vector<16x4xf32>
    %54 = arith.addf %51, %53 : vector<16x4xf32>
    %55 = tpu.transpose %54, [1, 0] : vector<16x4xf32> -> vector<4x16xf32>
    %56 = arith.truncf %42 : vector<16x32xf32> to vector<16x32xbf16>
    %57 = arith.truncf %41 : vector<16x32xf32> to vector<16x32xbf16>
    %cst_28 = arith.constant dense<0.000000e+00> : vector<16x16xf32>
    %58 = tpu.matmul %56, %57, %cst_28 {dimension_numbers = #tpu.dot_dimension_numbers<[1], [1], [0], [0], [0, 0, 1, 0], [], []>} : vector<16x32xbf16>, vector<16x32xbf16>, vector<16x16xf32> -> vector<16x16xf32>
    %c0_29 = arith.constant 0 : index
    %59 = memref.load %arg7[%c0_29] : memref<4xf32, #tpu.memory_space<smem>>
    %60 = vector.extract_strided_slice %54 {offsets = [0, 0], sizes = [16, 1], strides = [1, 1]} : vector<16x4xf32> to vector<16x1xf32>
    %61 = vector.extract_strided_slice %55 {offsets = [0, 0], sizes = [1, 16], strides = [1, 1]} : vector<4x16xf32> to vector<1x16xf32>
    %62 = vector.broadcast %60 : vector<16x1xf32> to vector<16x16xf32>
    %63 = vector.broadcast %61 : vector<1x16xf32> to vector<16x16xf32>
    %64 = arith.subf %62, %63 : vector<16x16xf32>
    %65 = vector.broadcast %59 : f32 to vector<16x16xf32>
    %66 = arith.mulf %65, %64 : vector<16x16xf32>
    %cst_30 = arith.constant -1.000000e+30 : f32
    %67 = vector.broadcast %cst_30 : f32 to vector<16x16xf32>
    %68 = arith.select %36, %66, %67 : vector<16x16xi1>, vector<16x16xf32>
    %69 = math.exp %68 : vector<16x16xf32>
    %70 = arith.mulf %58, %69 : vector<16x16xf32>
    %71 = arith.truncf %70 : vector<16x16xf32> to vector<16x16xbf16>
    %72 = vector.extract_strided_slice %39 {offsets = [0, 0], sizes = [16, 32], strides = [1, 1]} : vector<16x128xf32> to vector<16x32xf32>
    %73 = vector.extract_strided_slice %40 {offsets = [0, 0], sizes = [16, 1], strides = [1, 1]} : vector<16x4xf32> to vector<16x1xf32>
    %74 = vector.broadcast %73 : vector<16x1xf32> to vector<16x32xf32>
    %75 = arith.mulf %72, %74 : vector<16x32xf32>
    %76 = arith.truncf %75 : vector<16x32xf32> to vector<16x32xbf16>
    %cst_31 = arith.constant dense<0.000000e+00> : vector<16x32xf32>
    %77 = tpu.matmul %71, %76, %cst_31 {dimension_numbers = #tpu.dot_dimension_numbers<[1], [0], [0], [1], [0, 0, 1, 1], [], []>} : vector<16x16xbf16>, vector<16x32xbf16>, vector<16x32xf32> -> vector<16x32xf32>
    %c1 = arith.constant 1 : index
    %78 = memref.load %arg7[%c1] : memref<4xf32, #tpu.memory_space<smem>>
    %79 = vector.extract_strided_slice %54 {offsets = [0, 1], sizes = [16, 1], strides = [1, 1]} : vector<16x4xf32> to vector<16x1xf32>
    %80 = vector.extract_strided_slice %55 {offsets = [1, 0], sizes = [1, 16], strides = [1, 1]} : vector<4x16xf32> to vector<1x16xf32>
    %81 = vector.broadcast %79 : vector<16x1xf32> to vector<16x16xf32>
    %82 = vector.broadcast %80 : vector<1x16xf32> to vector<16x16xf32>
    %83 = arith.subf %81, %82 : vector<16x16xf32>
    %84 = vector.broadcast %78 : f32 to vector<16x16xf32>
    %85 = arith.mulf %84, %83 : vector<16x16xf32>
    %cst_32 = arith.constant -1.000000e+30 : f32
    %86 = vector.broadcast %cst_32 : f32 to vector<16x16xf32>
    %87 = arith.select %36, %85, %86 : vector<16x16xi1>, vector<16x16xf32>
    %88 = math.exp %87 : vector<16x16xf32>
    %89 = arith.mulf %58, %88 : vector<16x16xf32>
    %90 = arith.truncf %89 : vector<16x16xf32> to vector<16x16xbf16>
    %91 = vector.extract_strided_slice %39 {offsets = [0, 32], sizes = [16, 32], strides = [1, 1]} : vector<16x128xf32> to vector<16x32xf32>
    %92 = vector.extract_strided_slice %40 {offsets = [0, 1], sizes = [16, 1], strides = [1, 1]} : vector<16x4xf32> to vector<16x1xf32>
    %93 = vector.broadcast %92 : vector<16x1xf32> to vector<16x32xf32>
    %94 = arith.mulf %91, %93 : vector<16x32xf32>
    %95 = arith.truncf %94 : vector<16x32xf32> to vector<16x32xbf16>
    %cst_33 = arith.constant dense<0.000000e+00> : vector<16x32xf32>
    %96 = tpu.matmul %90, %95, %cst_33 {dimension_numbers = #tpu.dot_dimension_numbers<[1], [0], [0], [1], [0, 0, 1, 1], [], []>} : vector<16x16xbf16>, vector<16x32xbf16>, vector<16x32xf32> -> vector<16x32xf32>
    %c2 = arith.constant 2 : index
    %97 = memref.load %arg7[%c2] : memref<4xf32, #tpu.memory_space<smem>>
    %98 = vector.extract_strided_slice %54 {offsets = [0, 2], sizes = [16, 1], strides = [1, 1]} : vector<16x4xf32> to vector<16x1xf32>
    %99 = vector.extract_strided_slice %55 {offsets = [2, 0], sizes = [1, 16], strides = [1, 1]} : vector<4x16xf32> to vector<1x16xf32>
    %100 = vector.broadcast %98 : vector<16x1xf32> to vector<16x16xf32>
    %101 = vector.broadcast %99 : vector<1x16xf32> to vector<16x16xf32>
    %102 = arith.subf %100, %101 : vector<16x16xf32>
    %103 = vector.broadcast %97 : f32 to vector<16x16xf32>
    %104 = arith.mulf %103, %102 : vector<16x16xf32>
    %cst_34 = arith.constant -1.000000e+30 : f32
    %105 = vector.broadcast %cst_34 : f32 to vector<16x16xf32>
    %106 = arith.select %36, %104, %105 : vector<16x16xi1>, vector<16x16xf32>
    %107 = math.exp %106 : vector<16x16xf32>
    %108 = arith.mulf %58, %107 : vector<16x16xf32>
    %109 = arith.truncf %108 : vector<16x16xf32> to vector<16x16xbf16>
    %110 = vector.extract_strided_slice %39 {offsets = [0, 64], sizes = [16, 32], strides = [1, 1]} : vector<16x128xf32> to vector<16x32xf32>
    %111 = vector.extract_strided_slice %40 {offsets = [0, 2], sizes = [16, 1], strides = [1, 1]} : vector<16x4xf32> to vector<16x1xf32>
    %112 = vector.broadcast %111 : vector<16x1xf32> to vector<16x32xf32>
    %113 = arith.mulf %110, %112 : vector<16x32xf32>
    %114 = arith.truncf %113 : vector<16x32xf32> to vector<16x32xbf16>
    %cst_35 = arith.constant dense<0.000000e+00> : vector<16x32xf32>
    %115 = tpu.matmul %109, %114, %cst_35 {dimension_numbers = #tpu.dot_dimension_numbers<[1], [0], [0], [1], [0, 0, 1, 1], [], []>} : vector<16x16xbf16>, vector<16x32xbf16>, vector<16x32xf32> -> vector<16x32xf32>
    %c3 = arith.constant 3 : index
    %116 = memref.load %arg7[%c3] : memref<4xf32, #tpu.memory_space<smem>>
    %117 = vector.extract_strided_slice %54 {offsets = [0, 3], sizes = [16, 1], strides = [1, 1]} : vector<16x4xf32> to vector<16x1xf32>
    %118 = vector.extract_strided_slice %55 {offsets = [3, 0], sizes = [1, 16], strides = [1, 1]} : vector<4x16xf32> to vector<1x16xf32>
    %119 = vector.broadcast %117 : vector<16x1xf32> to vector<16x16xf32>
    %120 = vector.broadcast %118 : vector<1x16xf32> to vector<16x16xf32>
    %121 = arith.subf %119, %120 : vector<16x16xf32>
    %122 = vector.broadcast %116 : f32 to vector<16x16xf32>
    %123 = arith.mulf %122, %121 : vector<16x16xf32>
    %cst_36 = arith.constant -1.000000e+30 : f32
    %124 = vector.broadcast %cst_36 : f32 to vector<16x16xf32>
    %125 = arith.select %36, %123, %124 : vector<16x16xi1>, vector<16x16xf32>
    %126 = math.exp %125 : vector<16x16xf32>
    %127 = arith.mulf %58, %126 : vector<16x16xf32>
    %128 = arith.truncf %127 : vector<16x16xf32> to vector<16x16xbf16>
    %129 = vector.extract_strided_slice %39 {offsets = [0, 96], sizes = [16, 32], strides = [1, 1]} : vector<16x128xf32> to vector<16x32xf32>
    %130 = vector.extract_strided_slice %40 {offsets = [0, 3], sizes = [16, 1], strides = [1, 1]} : vector<16x4xf32> to vector<16x1xf32>
    %131 = vector.broadcast %130 : vector<16x1xf32> to vector<16x32xf32>
    %132 = arith.mulf %129, %131 : vector<16x32xf32>
    %133 = arith.truncf %132 : vector<16x32xf32> to vector<16x32xbf16>
    %cst_37 = arith.constant dense<0.000000e+00> : vector<16x32xf32>
    %134 = tpu.matmul %128, %133, %cst_37 {dimension_numbers = #tpu.dot_dimension_numbers<[1], [0], [0], [1], [0, 0, 1, 1], [], []>} : vector<16x16xbf16>, vector<16x32xbf16>, vector<16x32xf32> -> vector<16x32xf32>
    %135 = tpu.concatenate %77, %96, %115, %134 in 1 : vector<16x32xf32>, vector<16x32xf32>, vector<16x32xf32>, vector<16x32xf32> -> vector<16x128xf32>
    %136 = vector.extract_strided_slice %20 {offsets = [16, 0], sizes = [16, 128], strides = [1, 1]} : vector<32x128xf32> to vector<16x128xf32>
    %137 = vector.extract_strided_slice %33 {offsets = [16, 0], sizes = [16, 4], strides = [1, 1]} : vector<32x4xf32> to vector<16x4xf32>
    %138 = vector.extract_strided_slice %21 {offsets = [16, 0], sizes = [16, 32], strides = [1, 1]} : vector<32x32xf32> to vector<16x32xf32>
    %139 = vector.extract_strided_slice %22 {offsets = [16, 0], sizes = [16, 32], strides = [1, 1]} : vector<32x32xf32> to vector<16x32xf32>
    %c16_38 = arith.constant 16 : index
    %c0_39 = arith.constant 0 : index
    %140 = vector.load %arg10[%c16_38, %c0_39] : memref<32x4xf32, #tpu.memory_space<vmem>>, vector<16x4xf32>
    tpu.vector_store %arg10[%c16_38, %c0_39], %137 {strides = array<i32>} : memref<32x4xf32, #tpu.memory_space<vmem>>, vector<16x4xf32>,
    %c15_40 = arith.constant 15 : index
    %c0_41 = arith.constant 0 : index
    %141 = vector.load %arg10[%c15_40, %c0_41] : memref<32x4xf32, #tpu.memory_space<vmem>>, vector<16x4xf32>
    %142 = arith.addf %137, %141 : vector<16x4xf32>
    %c16_42 = arith.constant 16 : index
    %c0_43 = arith.constant 0 : index
    %143 = vector.load %arg10[%c16_42, %c0_43] : memref<32x4xf32, #tpu.memory_space<vmem>>, vector<16x4xf32>
    tpu.vector_store %arg10[%c16_42, %c0_43], %142 {strides = array<i32>} : memref<32x4xf32, #tpu.memory_space<vmem>>, vector<16x4xf32>,
    %c14_44 = arith.constant 14 : index
    %c0_45 = arith.constant 0 : index
    %144 = vector.load %arg10[%c14_44, %c0_45] : memref<32x4xf32, #tpu.memory_space<vmem>>, vector<16x4xf32>
    %145 = arith.addf %142, %144 : vector<16x4xf32>
    %c16_46 = arith.constant 16 : index
    %c0_47 = arith.constant 0 : index
    %146 = vector.load %arg10[%c16_46, %c0_47] : memref<32x4xf32, #tpu.memory_space<vmem>>, vector<16x4xf32>
    tpu.vector_store %arg10[%c16_46, %c0_47], %145 {strides = array<i32>} : memref<32x4xf32, #tpu.memory_space<vmem>>, vector<16x4xf32>,
    %c12_48 = arith.constant 12 : index
    %c0_49 = arith.constant 0 : index
    %147 = vector.load %arg10[%c12_48, %c0_49] : memref<32x4xf32, #tpu.memory_space<vmem>>, vector<16x4xf32>
    %148 = arith.addf %145, %147 : vector<16x4xf32>
    %c16_50 = arith.constant 16 : index
    %c0_51 = arith.constant 0 : index
    %149 = vector.load %arg10[%c16_50, %c0_51] : memref<32x4xf32, #tpu.memory_space<vmem>>, vector<16x4xf32>
    tpu.vector_store %arg10[%c16_50, %c0_51], %148 {strides = array<i32>} : memref<32x4xf32, #tpu.memory_space<vmem>>, vector<16x4xf32>,
    %c8_52 = arith.constant 8 : index
    %c0_53 = arith.constant 0 : index
    %150 = vector.load %arg10[%c8_52, %c0_53] : memref<32x4xf32, #tpu.memory_space<vmem>>, vector<16x4xf32>
    %151 = arith.addf %148, %150 : vector<16x4xf32>
    %152 = tpu.transpose %151, [1, 0] : vector<16x4xf32> -> vector<4x16xf32>
    %153 = arith.truncf %139 : vector<16x32xf32> to vector<16x32xbf16>
    %154 = arith.truncf %138 : vector<16x32xf32> to vector<16x32xbf16>
    %cst_54 = arith.constant dense<0.000000e+00> : vector<16x16xf32>
    %155 = tpu.matmul %153, %154, %cst_54 {dimension_numbers = #tpu.dot_dimension_numbers<[1], [1], [0], [0], [0, 0, 1, 0], [], []>} : vector<16x32xbf16>, vector<16x32xbf16>, vector<16x16xf32> -> vector<16x16xf32>
    %c0_55 = arith.constant 0 : index
    %156 = memref.load %arg7[%c0_55] : memref<4xf32, #tpu.memory_space<smem>>
    %157 = vector.extract_strided_slice %151 {offsets = [0, 0], sizes = [16, 1], strides = [1, 1]} : vector<16x4xf32> to vector<16x1xf32>
    %158 = vector.extract_strided_slice %152 {offsets = [0, 0], sizes = [1, 16], strides = [1, 1]} : vector<4x16xf32> to vector<1x16xf32>
    %159 = vector.broadcast %157 : vector<16x1xf32> to vector<16x16xf32>
    %160 = vector.broadcast %158 : vector<1x16xf32> to vector<16x16xf32>
    %161 = arith.subf %159, %160 : vector<16x16xf32>
    %162 = vector.broadcast %156 : f32 to vector<16x16xf32>
    %163 = arith.mulf %162, %161 : vector<16x16xf32>
    %cst_56 = arith.constant -1.000000e+30 : f32
    %164 = vector.broadcast %cst_56 : f32 to vector<16x16xf32>
    %165 = arith.select %36, %163, %164 : vector<16x16xi1>, vector<16x16xf32>
    %166 = math.exp %165 : vector<16x16xf32>
    %167 = arith.mulf %155, %166 : vector<16x16xf32>
    %168 = arith.truncf %167 : vector<16x16xf32> to vector<16x16xbf16>
    %169 = vector.extract_strided_slice %136 {offsets = [0, 0], sizes = [16, 32], strides = [1, 1]} : vector<16x128xf32> to vector<16x32xf32>
    %170 = vector.extract_strided_slice %137 {offsets = [0, 0], sizes = [16, 1], strides = [1, 1]} : vector<16x4xf32> to vector<16x1xf32>
    %171 = vector.broadcast %170 : vector<16x1xf32> to vector<16x32xf32>
    %172 = arith.mulf %169, %171 : vector<16x32xf32>
    %173 = arith.truncf %172 : vector<16x32xf32> to vector<16x32xbf16>
    %cst_57 = arith.constant dense<0.000000e+00> : vector<16x32xf32>
    %174 = tpu.matmul %168, %173, %cst_57 {dimension_numbers = #tpu.dot_dimension_numbers<[1], [0], [0], [1], [0, 0, 1, 1], [], []>} : vector<16x16xbf16>, vector<16x32xbf16>, vector<16x32xf32> -> vector<16x32xf32>
    %c1_58 = arith.constant 1 : index
    %175 = memref.load %arg7[%c1_58] : memref<4xf32, #tpu.memory_space<smem>>
    %176 = vector.extract_strided_slice %151 {offsets = [0, 1], sizes = [16, 1], strides = [1, 1]} : vector<16x4xf32> to vector<16x1xf32>
    %177 = vector.extract_strided_slice %152 {offsets = [1, 0], sizes = [1, 16], strides = [1, 1]} : vector<4x16xf32> to vector<1x16xf32>
    %178 = vector.broadcast %176 : vector<16x1xf32> to vector<16x16xf32>
    %179 = vector.broadcast %177 : vector<1x16xf32> to vector<16x16xf32>
    %180 = arith.subf %178, %179 : vector<16x16xf32>
    %181 = vector.broadcast %175 : f32 to vector<16x16xf32>
    %182 = arith.mulf %181, %180 : vector<16x16xf32>
    %cst_59 = arith.constant -1.000000e+30 : f32
    %183 = vector.broadcast %cst_59 : f32 to vector<16x16xf32>
    %184 = arith.select %36, %182, %183 : vector<16x16xi1>, vector<16x16xf32>
    %185 = math.exp %184 : vector<16x16xf32>
    %186 = arith.mulf %155, %185 : vector<16x16xf32>
    %187 = arith.truncf %186 : vector<16x16xf32> to vector<16x16xbf16>
    %188 = vector.extract_strided_slice %136 {offsets = [0, 32], sizes = [16, 32], strides = [1, 1]} : vector<16x128xf32> to vector<16x32xf32>
    %189 = vector.extract_strided_slice %137 {offsets = [0, 1], sizes = [16, 1], strides = [1, 1]} : vector<16x4xf32> to vector<16x1xf32>
    %190 = vector.broadcast %189 : vector<16x1xf32> to vector<16x32xf32>
    %191 = arith.mulf %188, %190 : vector<16x32xf32>
    %192 = arith.truncf %191 : vector<16x32xf32> to vector<16x32xbf16>
    %cst_60 = arith.constant dense<0.000000e+00> : vector<16x32xf32>
    %193 = tpu.matmul %187, %192, %cst_60 {dimension_numbers = #tpu.dot_dimension_numbers<[1], [0], [0], [1], [0, 0, 1, 1], [], []>} : vector<16x16xbf16>, vector<16x32xbf16>, vector<16x32xf32> -> vector<16x32xf32>
    %c2_61 = arith.constant 2 : index
    %194 = memref.load %arg7[%c2_61] : memref<4xf32, #tpu.memory_space<smem>>
    %195 = vector.extract_strided_slice %151 {offsets = [0, 2], sizes = [16, 1], strides = [1, 1]} : vector<16x4xf32> to vector<16x1xf32>
    %196 = vector.extract_strided_slice %152 {offsets = [2, 0], sizes = [1, 16], strides = [1, 1]} : vector<4x16xf32> to vector<1x16xf32>
    %197 = vector.broadcast %195 : vector<16x1xf32> to vector<16x16xf32>
    %198 = vector.broadcast %196 : vector<1x16xf32> to vector<16x16xf32>
    %199 = arith.subf %197, %198 : vector<16x16xf32>
    %200 = vector.broadcast %194 : f32 to vector<16x16xf32>
    %201 = arith.mulf %200, %199 : vector<16x16xf32>
    %cst_62 = arith.constant -1.000000e+30 : f32
    %202 = vector.broadcast %cst_62 : f32 to vector<16x16xf32>
    %203 = arith.select %36, %201, %202 : vector<16x16xi1>, vector<16x16xf32>
    %204 = math.exp %203 : vector<16x16xf32>
    %205 = arith.mulf %155, %204 : vector<16x16xf32>
    %206 = arith.truncf %205 : vector<16x16xf32> to vector<16x16xbf16>
    %207 = vector.extract_strided_slice %136 {offsets = [0, 64], sizes = [16, 32], strides = [1, 1]} : vector<16x128xf32> to vector<16x32xf32>
    %208 = vector.extract_strided_slice %137 {offsets = [0, 2], sizes = [16, 1], strides = [1, 1]} : vector<16x4xf32> to vector<16x1xf32>
    %209 = vector.broadcast %208 : vector<16x1xf32> to vector<16x32xf32>
    %210 = arith.mulf %207, %209 : vector<16x32xf32>
    %211 = arith.truncf %210 : vector<16x32xf32> to vector<16x32xbf16>
    %cst_63 = arith.constant dense<0.000000e+00> : vector<16x32xf32>
    %212 = tpu.matmul %206, %211, %cst_63 {dimension_numbers = #tpu.dot_dimension_numbers<[1], [0], [0], [1], [0, 0, 1, 1], [], []>} : vector<16x16xbf16>, vector<16x32xbf16>, vector<16x32xf32> -> vector<16x32xf32>
    %c3_64 = arith.constant 3 : index
    %213 = memref.load %arg7[%c3_64] : memref<4xf32, #tpu.memory_space<smem>>
    %214 = vector.extract_strided_slice %151 {offsets = [0, 3], sizes = [16, 1], strides = [1, 1]} : vector<16x4xf32> to vector<16x1xf32>
    %215 = vector.extract_strided_slice %152 {offsets = [3, 0], sizes = [1, 16], strides = [1, 1]} : vector<4x16xf32> to vector<1x16xf32>
    %216 = vector.broadcast %214 : vector<16x1xf32> to vector<16x16xf32>
    %217 = vector.broadcast %215 : vector<1x16xf32> to vector<16x16xf32>
    %218 = arith.subf %216, %217 : vector<16x16xf32>
    %219 = vector.broadcast %213 : f32 to vector<16x16xf32>
    %220 = arith.mulf %219, %218 : vector<16x16xf32>
    %cst_65 = arith.constant -1.000000e+30 : f32
    %221 = vector.broadcast %cst_65 : f32 to vector<16x16xf32>
    %222 = arith.select %36, %220, %221 : vector<16x16xi1>, vector<16x16xf32>
    %223 = math.exp %222 : vector<16x16xf32>
    %224 = arith.mulf %155, %223 : vector<16x16xf32>
    %225 = arith.truncf %224 : vector<16x16xf32> to vector<16x16xbf16>
    %226 = vector.extract_strided_slice %136 {offsets = [0, 96], sizes = [16, 32], strides = [1, 1]} : vector<16x128xf32> to vector<16x32xf32>
    %227 = vector.extract_strided_slice %137 {offsets = [0, 3], sizes = [16, 1], strides = [1, 1]} : vector<16x4xf32> to vector<16x1xf32>
    %228 = vector.broadcast %227 : vector<16x1xf32> to vector<16x32xf32>
    %229 = arith.mulf %226, %228 : vector<16x32xf32>
    %230 = arith.truncf %229 : vector<16x32xf32> to vector<16x32xbf16>
    %cst_66 = arith.constant dense<0.000000e+00> : vector<16x32xf32>
    %231 = tpu.matmul %225, %230, %cst_66 {dimension_numbers = #tpu.dot_dimension_numbers<[1], [0], [0], [1], [0, 0, 1, 1], [], []>} : vector<16x16xbf16>, vector<16x32xbf16>, vector<16x32xf32> -> vector<16x32xf32>
    %232 = tpu.concatenate %174, %193, %212, %231 in 1 : vector<16x32xf32>, vector<16x32xf32>, vector<16x32xf32>, vector<16x32xf32> -> vector<16x128xf32>
    %233 = tpu.concatenate %135, %232 in 0 : vector<16x128xf32>, vector<16x128xf32> -> vector<32x128xf32>
    %c0_67 = arith.constant 0 : index
    %c0_68 = arith.constant 0 : index
    %234 = vector.load %arg8[%c0_67, %c0_68] : memref<1x128xf32, #tpu.memory_space<vmem>>, vector<1x128xf32>
    %235 = vector.broadcast %234 : vector<1x128xf32> to vector<32x128xf32>
    %236 = arith.mulf %20, %235 : vector<32x128xf32>
    %237 = arith.addf %233, %236 : vector<32x128xf32>
    %cst_69 = arith.constant 0.000000e+00 : f32
    %238 = vector.broadcast %cst_69 : f32 to vector<32x128xf32>
    %239 = arith.subf %238, %19 : vector<32x128xf32>
    %240 = math.exp %239 : vector<32x128xf32>
    %cst_70 = arith.constant 1.000000e+00 : f32
    %241 = vector.broadcast %cst_70 : f32 to vector<32x128xf32>
    %242 = arith.addf %241, %240 : vector<32x128xf32>
    %243 = tpu.reciprocal %242 {approx = true} : vector<32x128xf32> -> vector<32x128xf32>
    %244 = arith.mulf %19, %243 : vector<32x128xf32>
    %245 = arith.mulf %237, %244 : vector<32x128xf32>
    %246 = arith.mulf %245, %245 : vector<32x128xf32>
    %cst_71 = arith.constant dense<0.000000e+00> : vector<32xf32>
    %247 = vector.multi_reduction <add>, %246, %cst_71 [1] : vector<32x128xf32> to vector<32xf32>
    %248 = vector.shape_cast %247 : vector<32xf32> to vector<32x1xf32>
    %cst_72 = arith.constant 1.280000e+02 : f32
    %249 = vector.broadcast %cst_72 : f32 to vector<32x1xf32>
    %250 = arith.divf %248, %249 : vector<32x1xf32>
    %cst_73 = arith.constant 9.99999974E-6 : f32
    %251 = vector.broadcast %cst_73 : f32 to vector<32x1xf32>
    %252 = arith.addf %250, %251 : vector<32x1xf32>
    %253 = math.rsqrt %252 : vector<32x1xf32>
    %254 = vector.broadcast %253 : vector<32x1xf32> to vector<32x128xf32>
    %255 = arith.mulf %245, %254 : vector<32x128xf32>
    %c0_74 = arith.constant 0 : index
    %c0_75 = arith.constant 0 : index
    %256 = vector.load %arg6[%c0_74, %c0_75] : memref<1x128xf32, #tpu.memory_space<vmem>>, vector<1x128xf32>
    %257 = vector.broadcast %256 : vector<1x128xf32> to vector<32x128xf32>
    %258 = arith.mulf %255, %257 : vector<32x128xf32>
    %259 = arith.truncf %258 : vector<32x128xf32> to vector<32x128xbf16>
    %c0_76 = arith.constant 0 : index
    %c0_77 = arith.constant 0 : index
    %260 = vector.load %arg4[%c0_76, %c0_77] : memref<128x64xbf16, #tpu.memory_space<vmem>>, vector<128x64xbf16>
    %cst_78 = arith.constant dense<0.000000e+00> : vector<32x64xf32>
    %261 = tpu.matmul %259, %260, %cst_78 {dimension_numbers = #tpu.dot_dimension_numbers<[1], [0], [0], [1], [0, 0, 1, 1], [], []>} : vector<32x128xbf16>, vector<128x64xbf16>, vector<32x64xf32> -> vector<32x64xf32>
    %262 = arith.addf %0, %261 : vector<32x64xf32>
    %c0_79 = arith.constant 0 : index
    %c0_80 = arith.constant 0 : index
    %263 = vector.load %arg9[%c0_79, %c0_80] : memref<32x64xf32, #tpu.memory_space<vmem>>, vector<32x64xf32>
    tpu.vector_store %arg9[%c0_79, %c0_80], %262 {strides = array<i32>} : memref<32x64xf32, #tpu.memory_space<vmem>>, vector<32x64xf32>,
    return
  }
  func.func @transform_0(%arg0: i32) -> (i32, i32) {
    %c0_i32 = arith.constant 0 : i32
    %c0_i32_0 = arith.constant 0 : i32
    return %arg0, %c0_i32 : i32, i32
  }
  func.func @transform_1(%arg0: i32) -> (i32, i32) {
    %c0_i32 = arith.constant 0 : i32
    %c0_i32_0 = arith.constant 0 : i32
    %c0_i32_1 = arith.constant 0 : i32
    return %c0_i32, %c0_i32_0 : i32, i32
  }
  func.func @transform_2(%arg0: i32) -> (i32, i32) {
    %c0_i32 = arith.constant 0 : i32
    %c0_i32_0 = arith.constant 0 : i32
    %c0_i32_1 = arith.constant 0 : i32
    return %c0_i32, %c0_i32_0 : i32, i32
  }
  func.func @transform_3(%arg0: i32) -> (i32, i32) {
    %c0_i32 = arith.constant 0 : i32
    %c0_i32_0 = arith.constant 0 : i32
    %c0_i32_1 = arith.constant 0 : i32
    return %c0_i32, %c0_i32_0 : i32, i32
  }
  func.func @transform_4(%arg0: i32) -> (i32, i32) {
    %c0_i32 = arith.constant 0 : i32
    %c0_i32_0 = arith.constant 0 : i32
    %c0_i32_1 = arith.constant 0 : i32
    return %c0_i32, %c0_i32_0 : i32, i32
  }
  func.func @transform_5(%arg0: i32) -> (i32, i32) {
    %c0_i32 = arith.constant 0 : i32
    %c0_i32_0 = arith.constant 0 : i32
    %c0_i32_1 = arith.constant 0 : i32
    return %c0_i32, %c0_i32_0 : i32, i32
  }
  func.func @transform_6(%arg0: i32) -> i32 {
    %c0_i32 = arith.constant 0 : i32
    %c0_i32_0 = arith.constant 0 : i32
    return %c0_i32 : i32
  }
  func.func @transform_7(%arg0: i32) -> (i32, i32) {
    %c0_i32 = arith.constant 0 : i32
    %c0_i32_0 = arith.constant 0 : i32
    %c0_i32_1 = arith.constant 0 : i32
    return %c0_i32, %c0_i32_0 : i32, i32
  }
  func.func @transform_8(%arg0: i32) -> (i32, i32) {
    %c0_i32 = arith.constant 0 : i32
    %c0_i32_0 = arith.constant 0 : i32
    return %arg0, %c0_i32 : i32, i32
  }
}

</mosaic_0001>

<llo_original>
// kernel: tpu_custom_call.1
$region0: #{tpu_custom_call.1}
  #allocation0 [shape = 'u32[]', space=smem, size = 0x4, offset = 0x4, fixed_abs, tag = 'smem constant byte address 0x4 - core index']
  #allocation1 [shape = 'u32[144,128]{1,0:T(1,128)}', space=vmem, size = 0x12000, scoped, tag = 'internal scratch']
  #allocation2 [shape = 'f32[32,4]{1,0:T(8,128)}', space=vmem, size = 0x4000, scoped, tag = 'scratch operand']
  %s0 = inlined_call_operand.vmem [shape: f32[64,64], index: 0, kind: input, shape index: {}]
  %s1 = inlined_call_operand.hbm [shape: bf16[64,256], index: 1, kind: input, shape index: {}]
  %s2 = inlined_call_operand.hbm [shape: f32[64,68], index: 2, kind: input, shape index: {}]
  %s3 = inlined_call_operand.vmem [shape: bf16[128,64], index: 3, kind: input, shape index: {}]
  %s4 = inlined_call_operand.vmem [shape: f32[1,64], index: 4, kind: input, shape index: {}]
  %s5 = inlined_call_operand.vmem [shape: f32[1,128], index: 5, kind: input, shape index: {}]
  %s6 = inlined_call_operand.vmem [shape: f32[4], index: 6, kind: input, shape index: {}]
  %s7 = inlined_call_operand.vmem [shape: f32[1,128], index: 7, kind: input, shape index: {}]
  %s8 = inlined_call_operand.hbm [shape: f32[64,64], index: 8, kind: output, shape index: {}]
  %s9 = sld [smem:[#allocation0]]
  $region77: #{tpu_custom_call.1} parent=0
    _
  %s11 = ssub.s32 1, %s9
  %s12 = scalar_select 0, %s11, %s9
  $region1: #{tpu_custom_call.1} parent=0
    #allocation3 [shape = 'u8[32768]{0}', space=vmem, size = 0x8000, scoped, tag = 'input window, operand 1, single buffered']
    #allocation4 [shape = 's32[2]{0}', space=sflag, size = 0x8, scoped, tag = 'scoped memory for tpu_custom_call.1']
    #allocation5 [shape = 's32[2]{0}', space=sflag, size = 0x8, scoped, tag = 'scoped memory for tpu_custom_call.1']
    #allocation6 [shape = 's32[2]{0}', space=sflag, size = 0x8, scoped, tag = 'scoped memory for tpu_custom_call.1']
    #allocation7 [shape = 'u8[32768]{0}', space=vmem, size = 0x8000, scoped, tag = 'input window, operand 2, single buffered']
    #allocation8 [shape = 's32[1]{0}', space=sflag, size = 0x4, scoped, tag = 'scoped memory for tpu_custom_call.1']
    #allocation9 [shape = 'u8[512]{0}', space=smem, size = 0x200, scoped, tag = 'input window, operand 6, single buffered']
    #allocation10 [shape = 'u8[32768]{0}', space=vmem, size = 0x8000, scoped, tag = 'output window, operand 0']
    %13 = vsyncpa [#allocation4], 0
    %14 = vsyncpa [#allocation8], 0
    %15 = vsyncpa [#allocation6], 0
    %16 = vsyncpa [#allocation5], 0
    %s17 = scalar_lea.sflag [#allocation5], 1
    %18 = vsyncpa %s17, 0
    loop: start=0, step=1, limit=4
    $region2: #{tpu_custom_call.1} parent=1 // loop_pre_header
      _
    $region3: #{tpu_custom_call.1} parent=1 // loop_header
      %s20 = sphi 0, %s24
      %p21 = scmp.ge.s32.totalorder %s20, 4
      %s30 = sphi 0, %s32
      %s33 = sphi 0, %s30
      %s34 = sphi 0, %s33
      %s50 = sphi 0, %s34
      %s54 = sphi 0, %s54
      %s56 = sphi 0, %s54
      %s57 = sphi 0, %s56
      %s71 = sphi 0, %s57
      %s75 = sphi 0, %s75
      %s77 = sphi 0, %s75
      %s78 = sphi 0, %s77
      %s92 = sphi 0, %s78
      %s96 = sphi 0, %s96
      %s98 = sphi 0, %s96
      %s99 = sphi 0, %s98
      %s113 = sphi 0, %s99
      %s117 = sphi 0, %s117
      %s119 = sphi 0, %s117
      %s120 = sphi 0, %s119
      %s134 = sphi 0, %s120
      %s138 = sphi 0, %s138
      %s140 = sphi 0, %s138
      %s141 = sphi 0, %s140
      %s155 = sphi 0, %s141
      %s159 = sphi 0, %s159
      %s161 = sphi 0, %s159
      %s162 = sphi 0, %s161
      %s176 = sphi 0, %s162
      %s180 = sphi 0, %s180
      %s182 = sphi 0, %s180
      %s183 = sphi 0, %s182
      %s197 = sphi 0, %s183
      %s203 = sphi 0, %s205
      %s206 = sphi 0, %s203
      %s207 = sphi 0, %s206
      %s223 = sphi 0, %s207
    $region4: #{tpu_custom_call.1} parent=1 // loop_header_branch
      %23 = sbr.rel (%p21) target = $region8
    $region5: #{tpu_custom_call.1} parent=1 // loop_body
      %s25 = ssub.s32 %s20, 1
      %s26 = ssub.s32 %s20, 2
      %s27 = sadd.s32 %s20, 1
      %s28 = ssub.s32 %s20, %s27
      %p29 = scmp.eq.s32.totalorder %s28, 0
      %s31 = sadd.s32 %s30, 1
      %s32 = scalar_select %p29, %s30, %s31
      %p35 = pneg %p29
      %p36 = scmp.eq.s32.totalorder %s20, 1
      %p37 = por %p35, %p36
      %p38 = scmp.ne.s32.totalorder %s30, %s33
      %p39 = scmp.eq.s32.totalorder %s20, 0
      %p40 = por %p38, %p39
      %p41 = scmp.ne.s32.totalorder %s30, %s33
      %p42 = scmp.eq.s32.totalorder %s25, 1
      %p43 = por %p41, %p42
      %p44 = scmp.ne.s32.totalorder %s33, %s34
      %p45 = scmp.eq.s32.totalorder %s25, 0
      %p46 = por %p44, %p45
      %p47 = scmp.ne.s32.totalorder %s33, %s34
      %p48 = scmp.eq.s32.totalorder %s26, 1
      %p49 = por %p47, %p48
      %p51 = scmp.ne.s32.totalorder %s34, %s50
      %p52 = scmp.eq.s32.totalorder %s26, 0
      %p53 = por %p51, %p52
      %s55 = sadd.s32 %s54, 1
      %p58 = scmp.eq.s32.totalorder %s20, 1
      %p59 = scmp.ne.s32.totalorder %s54, %s56
      %p60 = scmp.eq.s32.totalorder %s20, 0
      %p61 = por %p59, %p60
      %p62 = scmp.ne.s32.totalorder %s54, %s56
      %p63 = scmp.eq.s32.totalorder %s25, 1
      %p64 = por %p62, %p63
      %p65 = scmp.ne.s32.totalorder %s56, %s57
      %p66 = scmp.eq.s32.totalorder %s25, 0
      %p67 = por %p65, %p66
      %p68 = scmp.ne.s32.totalorder %s56, %s57
      %p69 = scmp.eq.s32.totalorder %s26, 1
      %p70 = por %p68, %p69
      %p72 = scmp.ne.s32.totalorder %s57, %s71
      %p73 = scmp.eq.s32.totalorder %s26, 0
      %p74 = por %p72, %p73
      %s76 = sadd.s32 %s75, 1
      %p79 = scmp.eq.s32.totalorder %s20, 1
      %p80 = scmp.ne.s32.totalorder %s75, %s77
      %p81 = scmp.eq.s32.totalorder %s20, 0
      %p82 = por %p80, %p81
      %p83 = scmp.ne.s32.totalorder %s75, %s77
      %p84 = scmp.eq.s32.totalorder %s25, 1
      %p85 = por %p83, %p84
      %p86 = scmp.ne.s32.totalorder %s77, %s78
      %p87 = scmp.eq.s32.totalorder %s25, 0
      %p88 = por %p86, %p87
      %p89 = scmp.ne.s32.totalorder %s77, %s78
      %p90 = scmp.eq.s32.totalorder %s26, 1
      %p91 = por %p89, %p90
      %p93 = scmp.ne.s32.totalorder %s78, %s92
      %p94 = scmp.eq.s32.totalorder %s26, 0
      %p95 = por %p93, %p94
      %s97 = sadd.s32 %s96, 1
      %p100 = scmp.eq.s32.totalorder %s20, 1
      %p101 = scmp.ne.s32.totalorder %s96, %s98
      %p102 = scmp.eq.s32.totalorder %s20, 0
      %p103 = por %p101, %p102
      %p104 = scmp.ne.s32.totalorder %s96, %s98
      %p105 = scmp.eq.s32.totalorder %s25, 1
      %p106 = por %p104, %p105
      %p107 = scmp.ne.s32.totalorder %s98, %s99
      %p108 = scmp.eq.s32.totalorder %s25, 0
      %p109 = por %p107, %p108
      %p110 = scmp.ne.s32.totalorder %s98, %s99
      %p111 = scmp.eq.s32.totalorder %s26, 1
      %p112 = por %p110, %p111
      %p114 = scmp.ne.s32.totalorder %s99, %s113
      %p115 = scmp.eq.s32.totalorder %s26, 0
      %p116 = por %p114, %p115
      %s118 = sadd.s32 %s117, 1
      %p121 = scmp.eq.s32.totalorder %s20, 1
      %p122 = scmp.ne.s32.totalorder %s117, %s119
      %p123 = scmp.eq.s32.totalorder %s20, 0
      %p124 = por %p122, %p123
      %p125 = scmp.ne.s32.totalorder %s117, %s119
      %p126 = scmp.eq.s32.totalorder %s25, 1
      %p127 = por %p125, %p126
      %p128 = scmp.ne.s32.totalorder %s119, %s120
      %p129 = scmp.eq.s32.totalorder %s25, 0
      %p130 = por %p128, %p129
      %p131 = scmp.ne.s32.totalorder %s119, %s120
      %p132 = scmp.eq.s32.totalorder %s26, 1
      %p133 = por %p131, %p132
      %p135 = scmp.ne.s32.totalorder %s120, %s134
      %p136 = scmp.eq.s32.totalorder %s26, 0
      %p137 = por %p135, %p136
      %s139 = sadd.s32 %s138, 1
      %p142 = scmp.eq.s32.totalorder %s20, 1
      %p143 = scmp.ne.s32.totalorder %s138, %s140
      %p144 = scmp.eq.s32.totalorder %s20, 0
      %p145 = por %p143, %p144
      %p146 = scmp.ne.s32.totalorder %s138, %s140
      %p147 = scmp.eq.s32.totalorder %s25, 1
      %p148 = por %p146, %p147
      %p149 = scmp.ne.s32.totalorder %s140, %s141
      %p150 = scmp.eq.s32.totalorder %s25, 0
      %p151 = por %p149, %p150
      %p152 = scmp.ne.s32.totalorder %s140, %s141
      %p153 = scmp.eq.s32.totalorder %s26, 1
      %p154 = por %p152, %p153
      %p156 = scmp.ne.s32.totalorder %s141, %s155
      %p157 = scmp.eq.s32.totalorder %s26, 0
      %p158 = por %p156, %p157
      %s160 = sadd.s32 %s159, 1
      %p163 = scmp.eq.s32.totalorder %s20, 1
      %p164 = scmp.ne.s32.totalorder %s159, %s161
      %p165 = scmp.eq.s32.totalorder %s20, 0
      %p166 = por %p164, %p165
      %p167 = scmp.ne.s32.totalorder %s159, %s161
      %p168 = scmp.eq.s32.totalorder %s25, 1
      %p169 = por %p167, %p168
      %p170 = scmp.ne.s32.totalorder %s161, %s162
      %p171 = scmp.eq.s32.totalorder %s25, 0
      %p172 = por %p170, %p171
      %p173 = scmp.ne.s32.totalorder %s161, %s162
      %p174 = scmp.eq.s32.totalorder %s26, 1
      %p175 = por %p173, %p174
      %p177 = scmp.ne.s32.totalorder %s162, %s176
      %p178 = scmp.eq.s32.totalorder %s26, 0
      %p179 = por %p177, %p178
      %s181 = sadd.s32 %s180, 1
      %p184 = scmp.eq.s32.totalorder %s20, 1
      %p185 = scmp.ne.s32.totalorder %s180, %s182
      %p186 = scmp.eq.s32.totalorder %s20, 0
      %p187 = por %p185, %p186
      %p188 = scmp.ne.s32.totalorder %s180, %s182
      %p189 = scmp.eq.s32.totalorder %s25, 1
      %p190 = por %p188, %p189
      %p191 = scmp.ne.s32.totalorder %s182, %s183
      %p192 = scmp.eq.s32.totalorder %s25, 0
      %p193 = por %p191, %p192
      %p194 = scmp.ne.s32.totalorder %s182, %s183
      %p195 = scmp.eq.s32.totalorder %s26, 1
      %p196 = por %p194, %p195
      %p198 = scmp.ne.s32.totalorder %s183, %s197
      %p199 = scmp.eq.s32.totalorder %s26, 0
      %p200 = por %p198, %p199
      %s201 = ssub.s32 %s20, %s27
      %p202 = scmp.eq.s32.totalorder %s201, 0
      %s204 = sadd.s32 %s203, 1
      %s205 = scalar_select %p202, %s203, %s204
      %p208 = pneg %p202
      %p209 = scmp.eq.s32.totalorder %s20, 1
      %p210 = por %p208, %p209
      %p211 = scmp.ne.s32.totalorder %s203, %s206
      %p212 = scmp.eq.s32.totalorder %s20, 0
      %p213 = por %p211, %p212
      %p214 = scmp.ne.s32.totalorder %s203, %s206
      %p215 = scmp.eq.s32.totalorder %s25, 1
      %p216 = por %p214, %p215
      %p217 = scmp.ne.s32.totalorder %s206, %s207
      %p218 = scmp.eq.s32.totalorder %s25, 0
      %p219 = por %p217, %p218
      %p220 = scmp.ne.s32.totalorder %s206, %s207
      %p221 = scmp.eq.s32.totalorder %s26, 1
      %p222 = por %p220, %p221
      %p224 = scmp.ne.s32.totalorder %s207, %s223
      %p225 = scmp.eq.s32.totalorder %s26, 0
      %p226 = por %p224, %p225
      %p227 = scmp.le.s32.totalorder 1, %s20
      %p228 = scmp.lt.s32.totalorder %s20, 3
      %p229 = pnand %p227, %p228
      %p230 = pneg %p229
      // Predicated region
      $region9: #{tpu_custom_call.1} parent=5 // pred_check
        _
      $region10: #{tpu_custom_call.1} parent=5 // pred_check_branch
        %232 = sbr.rel (%p229) target = $region12
      $region11: #{tpu_custom_call.1} parent=5 // pred_region
        %s233 = ssub.s32 %s20, 1
        // Predicated region
        $region13: #{tpu_custom_call.1} parent=11 // pred_check
          %p234 = pneg %p67
        $region14: #{tpu_custom_call.1} parent=11 // pred_check_branch
          %236 = sbr.rel (%p234) target = $region16
        $region15: #{tpu_custom_call.1} parent=11 // pred_region
          %s238 = ssub.s32 1024, 1024
          %239 = vsyncadd [#allocation4], %s238
          %s240 = sshll.u32 [#allocation3], 4
          %s241 = int_to_ptr.vmem [resolvable:$true] %s240
          %246 = dma.hbm_to_vmem [thread:$0]  %s1, 1024, %s241, [#allocation4], 128, 128, 8
        $region16: #{tpu_custom_call.1} parent=11 // pred_fallthru
          _
        // Predicated region
        $region17: #{tpu_custom_call.1} parent=11 // pred_check
          %p247 = pneg %p88
        $region18: #{tpu_custom_call.1} parent=11 // pred_check_branch
          %249 = sbr.rel (%p247) target = $region20
        $region19: #{tpu_custom_call.1} parent=11 // pred_region
          %s251 = ssub.s32 1024, 1024
          %252 = vsyncadd [#allocation8], %s251
          %s253 = sshll.u32 [#allocation7], 4
          %s254 = int_to_ptr.vmem [resolvable:$true] %s253
          %259 = dma.hbm_to_vmem [thread:$0]  %s2, 1024, %s254, [#allocation8], 128, 128, 8
        $region20: #{tpu_custom_call.1} parent=11 // pred_fallthru
          _
        // Predicated region
        $region21: #{tpu_custom_call.1} parent=11 // pred_check
          %p260 = pneg %p109
        $region22: #{tpu_custom_call.1} parent=11 // pred_check_branch
          %262 = sbr.rel (%p260) target = $region24
        $region23: #{tpu_custom_call.1} parent=11 // pred_region
          _
        $region24: #{tpu_custom_call.1} parent=11 // pred_fallthru
          _
        // Predicated region
        $region25: #{tpu_custom_call.1} parent=11 // pred_check
          %p263 = pneg %p130
        $region26: #{tpu_custom_call.1} parent=11 // pred_check_branch
          %265 = sbr.rel (%p263) target = $region28
        $region27: #{tpu_custom_call.1} parent=11 // pred_region
          _
        $region28: #{tpu_custom_call.1} parent=11 // pred_fallthru
          _
        // Predicated region
        $region29: #{tpu_custom_call.1} parent=11 // pred_check
          %p266 = pneg %p151
        $region30: #{tpu_custom_call.1} parent=11 // pred_check_branch
          %268 = sbr.rel (%p266) target = $region32
        $region31: #{tpu_custom_call.1} parent=11 // pred_region
          _
        $region32: #{tpu_custom_call.1} parent=11 // pred_fallthru
          _
        // Predicated region
        $region33: #{tpu_custom_call.1} parent=11 // pred_check
          %p269 = pneg %p172
        $region34: #{tpu_custom_call.1} parent=11 // pred_check_branch
          %271 = sbr.rel (%p269) target = $region36
        $region35: #{tpu_custom_call.1} parent=11 // pred_region
          %s273 = ssub.s32 16, 16
          %274 = vsyncadd [#allocation6], %s273
          %s276 = sshll.u32 %s6, 4
          %s277 = int_to_ptr.vmem [resolvable:$true] %s276
          %279 = dma.vmem_to_smem %s277, 16, [#allocation9], [#allocation6]
        $region36: #{tpu_custom_call.1} parent=11 // pred_fallthru
          _
        // Predicated region
        $region37: #{tpu_custom_call.1} parent=11 // pred_check
          %p280 = pneg %p193
        $region38: #{tpu_custom_call.1} parent=11 // pred_check_branch
          %282 = sbr.rel (%p280) target = $region40
        $region39: #{tpu_custom_call.1} parent=11 // pred_region
          _
        $region40: #{tpu_custom_call.1} parent=11 // pred_fallthru
          _
      $region12: #{tpu_custom_call.1} parent=5 // pred_fallthru
        _
      %p283 = scmp.lt.s32.totalorder %s20, 2
      // Predicated region
      $region41: #{tpu_custom_call.1} parent=5 // pred_check
        %p284 = pneg %p283
      $region42: #{tpu_custom_call.1} parent=5 // pred_check_branch
        %286 = sbr.rel (%p284) target = $region44
      $region43: #{tpu_custom_call.1} parent=5 // pred_region
        // Predicated region
        $region45: #{tpu_custom_call.1} parent=43 // pred_check
          %p287 = pneg %p40
        $region46: #{tpu_custom_call.1} parent=43 // pred_check_branch
          %289 = sbr.rel (%p287) target = $region48
        $region47: #{tpu_custom_call.1} parent=43 // pred_region
          %s290 = smul.u32 4, %s20
          %p291 = scmp.lt.s32.totalorder %s290, 7
          %s292 = scalar_select %p291, %s290, 7
          %s293 = smul.addr %s292, 8
          %s294 = scalar_lea.vmem %s0, %s293
          %s295 = smul.u32 4, %s20
        $region48: #{tpu_custom_call.1} parent=43 // pred_fallthru
          _
      $region44: #{tpu_custom_call.1} parent=5 // pred_fallthru
        _
      %p296 = scmp.le.s32.totalorder 1, %s20
      %p297 = scmp.lt.s32.totalorder %s20, 3
      %p298 = pnand %p296, %p297
      %p299 = pneg %p298
      // Predicated region
      $region49: #{tpu_custom_call.1} parent=5 // pred_check
        _
      $region50: #{tpu_custom_call.1} parent=5 // pred_check_branch
        %301 = sbr.rel (%p298) target = $region52
      $region51: #{tpu_custom_call.1} parent=5 // pred_region
        %s302 = ssub.s32 %s20, 1
        // Predicated region
        $region53: #{tpu_custom_call.1} parent=51 // pred_check
          %p303 = pneg %p67
        $region54: #{tpu_custom_call.1} parent=51 // pred_check_branch
          %305 = sbr.rel (%p303) target = $region56
        $region55: #{tpu_custom_call.1} parent=51 // pred_region
          %306 = dma.done [#allocation4], 1024
        $region56: #{tpu_custom_call.1} parent=51 // pred_fallthru
          _
        // Predicated region
        $region57: #{tpu_custom_call.1} parent=51 // pred_check
          %p307 = pneg %p88
        $region58: #{tpu_custom_call.1} parent=51 // pred_check_branch
          %309 = sbr.rel (%p307) target = $region60
        $region59: #{tpu_custom_call.1} parent=51 // pred_region
          %310 = dma.done [#allocation8], 1024
        $region60: #{tpu_custom_call.1} parent=51 // pred_fallthru
          _
        // Predicated region
        $region61: #{tpu_custom_call.1} parent=51 // pred_check
          %p311 = pneg %p172
        $region62: #{tpu_custom_call.1} parent=51 // pred_check_branch
          %313 = sbr.rel (%p311) target = $region64
        $region63: #{tpu_custom_call.1} parent=51 // pred_region
          %314 = dma.done [#allocation6], 16
        $region64: #{tpu_custom_call.1} parent=51 // pred_fallthru
          _
        %315 = sfence
        %s316 = smul.u32 4, %s25
        %p317 = scmp.lt.s32.totalorder %s316, 7
        %s318 = scalar_select %p317, %s316, 7
        %s319 = smul.addr %s318, 8
        %s320 = scalar_lea.vmem %s0, %s319
        %p321 = pneg %p46
        %p322 = pneg %p43
        %p323 = pneg %p67
        %p324 = pneg %p64
        %p325 = pneg %p88
        %p326 = pneg %p85
        %p327 = pneg %p109
        %p328 = pneg %p106
        %p329 = pneg %p130
        %p330 = pneg %p127
        %p331 = pneg %p151
        %p332 = pneg %p148
        %p333 = pneg %p172
        %p334 = pneg %p169
        %p335 = pneg %p193
        %p336 = pneg %p190
        %p337 = pneg %p219
        %p338 = pneg %p216
        %s339 = sand.u32 %s206, 1
        %s340 = scalar_lea.sflag [#allocation5], %s339
        %s341 = sand.u32 %s206, 1
        %s342 = smul.addr %s341, 32
        %s343 = scalar_lea.vmem [#allocation10], %s342
        %s344 = smul.u32 4, %s25
        %p345 = scmp.lt.s32.totalorder %s344, 7
        %s346 = scalar_select %p345, %s344, 7
        %s347 = smul.addr %s346, 8
        %s348 = scalar_lea.vmem %s0, %s347
        %s349 = smul.u32 4, %s25
        %s350 = smul.u32 4, %s25
        %v352 = vld [vmem:[%s348] sm:$0xff]
        %v353 = vld [vmem:[%s348 + $0x8] sm:$0xff]
        %v354 = vld [vmem:[%s348 + $0x10] sm:$0xff]
        %v355 = vld [vmem:[%s348 + $0x18] sm:$0xff]
        %v356 = vmul.f32 %v352, %v352
        %v357 = vmul.f32 %v353, %v353
        %v358 = vmul.f32 %v354, %v354
        %v359 = vmul.f32 %v355, %v355
        %vm360 = vcmask 523264
        %v361 = vsel %vm360, %v356, 0.0
        %362 = vadd.xlane.f32.xlu0 %v361
        %v363 = vpop.xlane.xlu0 %362
        %v364 = vsel %vm360, %v357, 0.0
        %365 = vadd.xlane.f32.xlu0 %v364
        %v366 = vpop.xlane.xlu0 %365
        %v367 = vsel %vm360, %v358, 0.0
        %368 = vadd.xlane.f32.xlu0 %v367
        %v369 = vpop.xlane.xlu0 %368
        %v370 = vsel %vm360, %v359, 0.0
        %371 = vadd.xlane.f32.xlu0 %v370
        %v372 = vpop.xlane.xlu0 %371
        %v373 = vrcp.pop 64.0
        %v374 = vmul.f32 %v363, %v373
        %v375 = vmul.f32 %v366, %v373
        %v376 = vmul.f32 %v369, %v373
        %v377 = vmul.f32 %v372, %v373
        %v378 = vadd.f32 %v374, 1e-05
        %v379 = vadd.f32 %v375, 1e-05
        %v380 = vadd.f32 %v376, 1e-05
        %v381 = vadd.f32 %v377, 1e-05
        %v382 = vrsqrt.pop %v378
        %v383 = vrsqrt.pop %v379
        %v384 = vrsqrt.pop %v380
        %v385 = vrsqrt.pop %v381
        %v386 = vmul.f32 %v352, %v382
        %v387 = vmul.f32 %v353, %v383
        %v388 = vmul.f32 %v354, %v384
        %v389 = vmul.f32 %v355, %v385
        %v390 = vld [vmem:[%s4] sm:$0x1]
        %v392 = vlaneseq
        %v393 = vshrl.u32 %v392, 7
        %v394 = vsub.s32 0, %v393
        %v395 = vrot.slane %v390, %v394
        %v397 = vmul.f32 %v386, %v395
        %v398 = vmul.f32 %v387, %v395
        %v399 = vmul.f32 %v388, %v395
        %v400 = vmul.f32 %v389, %v395
        %v401 = vpack.c.bf16 %v398, %v397
        %v402 = vpack.c.bf16 %v400, %v399
        %v403 = vld [vmem:[#allocation3] sm:$0xff]
        %v404 = vld [vmem:[#allocation3 + $0x8] sm:$0xff]
        %v405 = vld [vmem:[#allocation3 + $0x10] sm:$0xff]
        %v406 = vld [vmem:[#allocation3 + $0x18] sm:$0xff]
        %v407 = vld [vmem:[#allocation3 + $0x20] sm:$0xff]
        %v408 = vld [vmem:[#allocation3 + $0x28] sm:$0xff]
        %v409 = vld [vmem:[#allocation3 + $0x30] sm:$0xff]
        %v410 = vld [vmem:[#allocation3 + $0x38] sm:$0xff]
        %v419 = vunpack.c.l.b16 %v403
        %v420 = vunpack.c.h.b16 %v403
        %v421 = vunpack.c.l.b16 %v404
        %v422 = vunpack.c.h.b16 %v404
        %v423 = vunpack.c.l.b16 %v405
        %v424 = vunpack.c.h.b16 %v405
        %v425 = vunpack.c.l.b16 %v406
        %v426 = vunpack.c.h.b16 %v406
        %v427 = vunpack.c.l.b16 %v407
        %v428 = vunpack.c.h.b16 %v407
        %v429 = vunpack.c.l.b16 %v408
        %v430 = vunpack.c.h.b16 %v408
        %v431 = vunpack.c.l.b16 %v409
        %v432 = vunpack.c.h.b16 %v409
        %v433 = vunpack.c.l.b16 %v410
        %v434 = vunpack.c.h.b16 %v410
        %v435 = vpack.c.b16 %v421, %v419
        %v436 = vpack.c.b16 %v422, %v420
        %v437 = vpack.c.b16 %v425, %v423
        %v438 = vpack.c.b16 %v426, %v424
        %v439 = vpack.c.b16 %v429, %v427
        %v440 = vpack.c.b16 %v430, %v428
        %v441 = vpack.c.b16 %v433, %v431
        %v442 = vpack.c.b16 %v434, %v432
        %v452 = vsel %vm360, %v401, 0
        %v455 = vsel %vm360, %v402, 0
        %457 = vmatprep.subr.bf16.mxu0 %v436
        %458 = vmatpush1.bf16.msra.mxu0 %v435
        %459 = vmatprep.subr.bf16.mxu0 %v438
        %460 = vmatpush1.bf16.msra.mxu0 %v437
        %461 = vmatprep.subr.bf16.mxu0 %v440
        %462 = vmatpush1.bf16.msra.mxu0 %v439
        %463 = vmatprep.subr.bf16.mxu0 %v442
        %464 = vmatpush1.bf16.msra.mxu0 %v441
        %465 = vmatprep.subr.bf16.mxu0 0
        %466 = vmatpush1.bf16.msra.mxu0 0
        %467 = vmatprep.subr.bf16.mxu0 0
        %468 = vmatpush1.bf16.msra.mxu0 0
        %469 = vmatprep.subr.bf16.mxu0 0
        %470 = vmatpush1.bf16.msra.mxu0 0
        %471 = vmatprep.subr.bf16.mxu0 0
        %472 = vmatpush1.bf16.msra.mxu0 0
        %473 = vmatprep.subr.bf16.mxu0 0
        %474 = vmatpush1.bf16.msra.mxu0 0
        %475 = vmatprep.subr.bf16.mxu0 0
        %476 = vmatpush1.bf16.msra.mxu0 0
        %477 = vmatprep.subr.bf16.mxu0 0
        %478 = vmatpush1.bf16.msra.mxu0 0
        %479 = vmatprep.subr.bf16.mxu0 0
        %480 = vmatpush1.bf16.msra.mxu0 0
        %481 = vmatprep.subr.bf16.mxu0 0
        %482 = vmatpush1.bf16.msra.mxu0 0
        %483 = vmatprep.subr.bf16.mxu0 0
        %484 = vmatpush1.bf16.msra.mxu0 0
        %485 = vmatprep.subr.bf16.mxu0 0
        %486 = vmatpush1.bf16.msra.mxu0 0
        %487 = vmatprep.subr.bf16.mxu0 0
        %488 = vmatpush1.bf16.msra.mxu0 0
        %489 = vmatprep.mubr.bf16.mxu0 0
        %490 = vmatmul.mubr.bf16.gmra.mrb[0].mxu0 %v452
        %v491 = vpop.f32.mrb[0].mxu0
        %v492 = vadd.f32 0.0, %v491
        %v493 = vpop.f32.mrb[0].mxu0
        %v494 = vadd.f32 0.0, %v493
        %v495 = vpop.f32.mrb[0].mxu0
        %v496 = vadd.f32 0.0, %v495
        %v497 = vpop.f32.mrb[0].mxu0
        %v498 = vadd.f32 0.0, %v497
        %499 = vmatprep.mubr.bf16.mxu0 0
        %500 = vmatmul.mubr.bf16.gmra.mrb[0].mxu0 %v455
        %v501 = vpop.f32.mrb[0].mxu0
        %v502 = vadd.f32 0.0, %v501
        %v503 = vpop.f32.mrb[0].mxu0
        %v504 = vadd.f32 0.0, %v503
        %v505 = vpop.f32.mrb[0].mxu0
        %v506 = vadd.f32 0.0, %v505
        %v507 = vpop.f32.mrb[0].mxu0
        %v508 = vadd.f32 0.0, %v507
        %509 = vdwg.mxu0
        %v510 = vld [vmem:[#allocation7] sm:$0xff]
        %v511 = vld [vmem:[#allocation7 + $0x8] sm:$0xff]
        %v512 = vld [vmem:[#allocation7 + $0x10] sm:$0xff]
        %v513 = vld [vmem:[#allocation7 + $0x18] sm:$0xff]
        %v514 = vld [vmem:[#allocation7 + $0x20] sm:$0xff]
        %v515 = vld [vmem:[#allocation7 + $0x28] sm:$0xff]
        %v516 = vld [vmem:[#allocation7 + $0x30] sm:$0xff]
        %v517 = vld [vmem:[#allocation7 + $0x38] sm:$0xff]
        %v519 = vsel %vm360, %v397, 0
        %v522 = vsel %vm360, %v398, 0
        %v525 = vsel %vm360, %v399, 0
        %v528 = vsel %vm360, %v400, 0
        %530 = vmatprep.subr.mxu0 0.0
        %531 = vmatpush1.msra.mxu0 %v510
        %532 = vmatprep.subr.mxu0 0.0
        %533 = vmatpush1.msra.mxu0 %v511
        %534 = vmatprep.subr.mxu0 0.0
        %535 = vmatpush1.msra.mxu0 %v512
        %536 = vmatprep.subr.mxu0 0.0
        %537 = vmatpush1.msra.mxu0 %v513
        %538 = vmatprep.subr.mxu0 0.0
        %539 = vmatpush1.msra.mxu0 %v514
        %540 = vmatprep.subr.mxu0 0.0
        %541 = vmatpush1.msra.mxu0 %v515
        %542 = vmatprep.subr.mxu0 0.0
        %543 = vmatpush1.msra.mxu0 %v516
        %544 = vmatprep.subr.mxu0 0.0
        %545 = vmatpush1.msra.mxu0 %v517
        %546 = vmatprep.subr.mxu0 0.0
        %547 = vmatpush1.msra.mxu0 0.0
        %548 = vmatprep.subr.mxu0 0.0
        %549 = vmatpush1.msra.mxu0 0.0
        %550 = vmatprep.subr.mxu0 0.0
        %551 = vmatpush1.msra.mxu0 0.0
        %552 = vmatprep.subr.mxu0 0.0
        %553 = vmatpush1.msra.mxu0 0.0
        %554 = vmatprep.subr.mxu0 0.0
        %555 = vmatpush1.msra.mxu0 0.0
        %556 = vmatprep.subr.mxu0 0.0
        %557 = vmatpush1.msra.mxu0 0.0
        %558 = vmatprep.subr.mxu0 0.0
        %559 = vmatpush1.msra.mxu0 0.0
        %560 = vmatprep.subr.mxu0 0.0
        %561 = vmatpush1.msra.mxu0 0.0
        %562 = vmatprep.subr.mxu0 0.0
        %563 = vmatpush1.msra.mxu0 0.0
        %564 = vmatprep.subr.mxu0 0.0
        %565 = vmatpush1.msra.mxu0 0.0
        %566 = vmatprep.subr.mxu0 0.0
        %567 = vmatpush1.msra.mxu0 0.0
        %568 = vmatprep.subr.mxu0 0.0
        %569 = vmatpush1.msra.mxu0 0.0
        %570 = vmatprep.subr.mxu0 0.0
        %571 = vmatpush1.msra.mxu0 0.0
        %572 = vmatprep.subr.mxu0 0.0
        %573 = vmatpush1.msra.mxu0 0.0
        %574 = vmatprep.subr.mxu0 0.0
        %575 = vmatpush1.msra.mxu0 0.0
        %576 = vmatprep.subr.mxu0 0.0
        %577 = vmatpush1.msra.mxu0 0.0
        %578 = vmatprep.subr.mxu0 0.0
        %579 = vmatpush1.msra.mxu0 0.0
        %580 = vmatprep.subr.mxu0 0.0
        %581 = vmatpush1.msra.mxu0 0.0
        %582 = vmatprep.subr.mxu0 0.0
        %583 = vmatpush1.msra.mxu0 0.0
        %584 = vmatprep.subr.mxu0 0.0
        %585 = vmatpush1.msra.mxu0 0.0
        %586 = vmatprep.subr.mxu0 0.0
        %587 = vmatpush1.msra.mxu0 0.0
        %588 = vmatprep.subr.mxu0 0.0
        %589 = vmatpush1.msra.mxu0 0.0
        %590 = vmatprep.subr.mxu0 0.0
        %591 = vmatpush1.msra.mxu0 0.0
        %592 = vmatprep.subr.mxu0 0.0
        %593 = vmatpush1.msra.mxu0 0.0
        %594 = vmatprep.mubr.f32.mxu0 0.0
        %595 = vmatmul.mubr.f32.gmra.mrb[0].mxu0 %v519
        %v596 = vpop.f32.mrb[0].mxu0
        %v597 = vadd.f32 0.0, %v596
        %v598 = vpop.f32.mrb[0].mxu0
        %599 = vmatprep.mubr.f32.mxu0 0.0
        %600 = vmatmul.mubr.f32.gmra.mrb[0].mxu0 %v522
        %v601 = vpop.f32.mrb[0].mxu0
        %v602 = vadd.f32 0.0, %v601
        %v603 = vpop.f32.mrb[0].mxu0
        %604 = vmatprep.mubr.f32.mxu0 0.0
        %605 = vmatmul.mubr.f32.gmra.mrb[0].mxu0 %v525
        %v606 = vpop.f32.mrb[0].mxu0
        %v607 = vadd.f32 0.0, %v606
        %v608 = vpop.f32.mrb[0].mxu0
        %609 = vmatprep.mubr.f32.mxu0 0.0
        %610 = vmatmul.mubr.f32.gmra.mrb[0].mxu0 %v528
        %v611 = vpop.f32.mrb[0].mxu0
        %v612 = vadd.f32 0.0, %v611
        %v613 = vpop.f32.mrb[0].mxu0
        %614 = vdwg.mxu0
        %v615 = vmax.f32 %v597, 0.0
        %v616 = vmax.f32 %v602, 0.0
        %v617 = vmax.f32 %v607, 0.0
        %v618 = vmax.f32 %v612, 0.0
        %v619 = vand.u32 2147483647, %v597
        %v620 = vand.u32 2147483647, %v602
        %v621 = vand.u32 2147483647, %v607
        %v622 = vand.u32 2147483647, %v612
        %v623 = vsub.f32 0.0, %v619
        %v624 = vsub.f32 0.0, %v620
        %v625 = vsub.f32 0.0, %v621
        %v626 = vsub.f32 0.0, %v622
        %v627 = vmul.f32 %v623, 1.442695
        %v628 = vpow.pop %v627
        %v629 = vmul.f32 %v624, 1.442695
        %v630 = vpow.pop %v629
        %v631 = vmul.f32 %v625, 1.442695
        %v632 = vpow.pop %v631
        %v633 = vmul.f32 %v626, 1.442695
        %v634 = vpow.pop %v633
        %v635 = vadd.f32 %v628, 1.0
        %v636 = vadd.f32 %v630, 1.0
        %v637 = vadd.f32 %v632, 1.0
        %v638 = vadd.f32 %v634, 1.0
        %v639 = vlog2.pop %v635
        %v640 = vmul.f32 %v639, 0.6931472
        %v641 = vlog2.pop %v636
        %v642 = vmul.f32 %v641, 0.6931472
        %v643 = vlog2.pop %v637
        %v644 = vmul.f32 %v643, 0.6931472
        %v645 = vlog2.pop %v638
        %v646 = vmul.f32 %v645, 0.6931472
        %v647 = vadd.f32 %v615, %v640
        %v648 = vadd.f32 %v616, %v642
        %v649 = vadd.f32 %v617, %v644
        %v650 = vadd.f32 %v618, %v646
        %v651 = vlaneseq
        %v652 = vshrl.u32 %v651, 7
        %v653 = vadd.s32 %v652, 8
        %v654 = vlaneseq
        %v655 = vand.u32 %v654, 127
        %vm656 = vcmp.ge.s32.totalorder %v652, %v655
        %vm657 = vcmp.ge.s32.totalorder %v653, %v655
        %vm658 = vcmask 31744
        %659 = vst.msk [vmem:[#allocation2] sm:$0xff] %vm658, 0.0
        %660 = vst.msk [vmem:[#allocation2 + $0x8] sm:$0xff] %vm658, 0.0
        %663 = vrot.lane.b32.xlu0 %v647, 64
        %v664 = vpop.permute.xlu0 %663
        %665 = vrot.lane.b32.xlu0 %v648, 64
        %v666 = vpop.permute.xlu0 %665
        %669 = vst.msk [vmem:[#allocation2 + $0x10] sm:$0xff] %vm658, %v664
        %670 = vst.msk [vmem:[#allocation2 + $0x18] sm:$0xff] %vm658, %v666
        %v671 = vld [vmem:[#allocation2 + $0xf] sm:$0xff]
        %v672 = vld [vmem:[#allocation2 + $0x17] sm:$0xff]
        %675 = vrot.lane.b32.xlu0 %v671, 64
        %v676 = vpop.permute.xlu0 %675
        %677 = vrot.lane.b32.xlu0 %v672, 64
        %v678 = vpop.permute.xlu0 %677
        %v681 = vadd.f32 %v647, %v676
        %v682 = vadd.f32 %v648, %v678
        %685 = vrot.lane.b32.xlu0 %v681, 64
        %v686 = vpop.permute.xlu0 %685
        %687 = vrot.lane.b32.xlu0 %v682, 64
        %v688 = vpop.permute.xlu0 %687
        %691 = vst.msk [vmem:[#allocation2 + $0x10] sm:$0xff] %vm658, %v686
        %692 = vst.msk [vmem:[#allocation2 + $0x18] sm:$0xff] %vm658, %v688
        %v693 = vld [vmem:[#allocation2 + $0xe] sm:$0xff]
        %v694 = vld [vmem:[#allocation2 + $0x16] sm:$0xff]
        %697 = vrot.lane.b32.xlu0 %v693, 64
        %v698 = vpop.permute.xlu0 %697
        %699 = vrot.lane.b32.xlu0 %v694, 64
        %v700 = vpop.permute.xlu0 %699
        %v703 = vadd.f32 %v681, %v698
        %v704 = vadd.f32 %v682, %v700
        %707 = vrot.lane.b32.xlu0 %v703, 64
        %v708 = vpop.permute.xlu0 %707
        %709 = vrot.lane.b32.xlu0 %v704, 64
        %v710 = vpop.permute.xlu0 %709
        %713 = vst.msk [vmem:[#allocation2 + $0x10] sm:$0xff] %vm658, %v708
        %714 = vst.msk [vmem:[#allocation2 + $0x18] sm:$0xff] %vm658, %v710
        %v715 = vld [vmem:[#allocation2 + $0xc] sm:$0xff]
        %v716 = vld [vmem:[#allocation2 + $0x14] sm:$0xff]
        %719 = vrot.lane.b32.xlu0 %v715, 64
        %v720 = vpop.permute.xlu0 %719
        %721 = vrot.lane.b32.xlu0 %v716, 64
        %v722 = vpop.permute.xlu0 %721
        %v725 = vadd.f32 %v703, %v720
        %v726 = vadd.f32 %v704, %v722
        %729 = vrot.lane.b32.xlu0 %v725, 64
        %v730 = vpop.permute.xlu0 %729
        %731 = vrot.lane.b32.xlu0 %v726, 64
        %v732 = vpop.permute.xlu0 %731
        %735 = vst.msk [vmem:[#allocation2 + $0x10] sm:$0xff] %vm658, %v730
        %736 = vst.msk [vmem:[#allocation2 + $0x18] sm:$0xff] %vm658, %v732
        %v737 = vld [vmem:[#allocation2 + $0x8] sm:$0xff]
        %v738 = vld [vmem:[#allocation2 + $0x10] sm:$0xff]
        %741 = vrot.lane.b32.xlu0 %v737, 64
        %v742 = vpop.permute.xlu0 %741
        %743 = vrot.lane.b32.xlu0 %v738, 64
        %v744 = vpop.permute.xlu0 %743
        %v747 = vadd.f32 %v725, %v742
        %v748 = vadd.f32 %v726, %v744
        %751 = vrot.lane.b32.xlu0 %v747, 64
        %v752 = vpop.permute.xlu0 %751
        %753 = vrot.lane.b32.xlu0 %v748, 64
        %v754 = vpop.permute.xlu0 %753
        %757 = vxpose.xlu0.b32.start [1/16] %v752, 128
        %758 = vxpose.xlu0.b32.cont [2/16] %v754, 128
        %759 = vxpose.xlu0.b32.cont [3/16] 0.0, 128
        %760 = vxpose.xlu0.b32.cont [4/16] 0.0, 128
        %761 = vxpose.xlu0.b32.cont [5/16] 0.0, 128
        %762 = vxpose.xlu0.b32.cont [6/16] 0.0, 128
        %763 = vxpose.xlu0.b32.cont [7/16] 0.0, 128
        %764 = vxpose.xlu0.b32.cont [8/16] 0.0, 128
        %765 = vxpose.xlu0.b32.cont [9/16] 0.0, 128
        %766 = vxpose.xlu0.b32.cont [10/16] 0.0, 128
        %767 = vxpose.xlu0.b32.cont [11/16] 0.0, 128
        %768 = vxpose.xlu0.b32.cont [12/16] 0.0, 128
        %769 = vxpose.xlu0.b32.cont [13/16] 0.0, 128
        %770 = vxpose.xlu0.b32.cont [14/16] 0.0, 128
        %771 = vxpose.xlu0.b32.cont [15/16] 0.0, 128
        %772 = vxpose.xlu0.b32.end [16/16] 0.0, 128
        %v773 = vpop.trf.xlu0
        %v774 = vpop.trf.xlu0
        %v775 = vpop.trf.xlu0
        %v776 = vpop.trf.xlu0
        %v777 = vpop.trf.xlu0
        %v778 = vpop.trf.xlu0
        %v779 = vpop.trf.xlu0
        %v780 = vpop.trf.xlu0
        %v781 = vpop.trf.xlu0
        %v782 = vpop.trf.xlu0
        %v783 = vpop.trf.xlu0
        %v784 = vpop.trf.xlu0
        %v785 = vpop.trf.xlu0
        %v786 = vpop.trf.xlu0
        %v787 = vpop.trf.xlu0
        %v788 = vpop.trf.xlu0
        %v789 = vpack.c.bf16 %v602, %v597
        %791 = vrot.lane.b32.xlu0 %v789, 96
        %v792 = vpop.permute.xlu0 %791
        %vm793 = vcmask 261120
        %v795 = vsel %vm793, %v792, 0
        %v798 = vsel %vm793, %v789, 0
        %800 = vmatprep.subr.bf16.mxu0 0
        %801 = vmatpush1.bf16.xpose.msra.mxu0 %v798
        %802 = vmatprep.subr.bf16.mxu0 0
        %803 = vmatpush1.bf16.xpose.msra.mxu0 0
        %804 = vmatprep.subr.bf16.mxu0 0
        %805 = vmatpush1.bf16.xpose.msra.mxu0 0
        %806 = vmatprep.subr.bf16.mxu0 0
        %807 = vmatpush1.bf16.xpose.msra.mxu0 0
        %808 = vmatprep.subr.bf16.mxu0 0
        %809 = vmatpush1.bf16.xpose.msra.mxu0 0
        %810 = vmatprep.subr.bf16.mxu0 0
        %811 = vmatpush1.bf16.xpose.msra.mxu0 0
        %812 = vmatprep.subr.bf16.mxu0 0
        %813 = vmatpush1.bf16.xpose.msra.mxu0 0
        %814 = vmatprep.subr.bf16.mxu0 0
        %815 = vmatpush1.bf16.xpose.msra.mxu0 0
        %816 = vmatprep.subr.bf16.mxu0 0
        %817 = vmatpush1.bf16.xpose.msra.mxu0 0
        %818 = vmatprep.subr.bf16.mxu0 0
        %819 = vmatpush1.bf16.xpose.msra.mxu0 0
        %820 = vmatprep.subr.bf16.mxu0 0
        %821 = vmatpush1.bf16.xpose.msra.mxu0 0
        %822 = vmatprep.subr.bf16.mxu0 0
        %823 = vmatpush1.bf16.xpose.msra.mxu0 0
        %824 = vmatprep.subr.bf16.mxu0 0
        %825 = vmatpush1.bf16.xpose.msra.mxu0 0
        %826 = vmatprep.subr.bf16.mxu0 0
        %827 = vmatpush1.bf16.xpose.msra.mxu0 0
        %828 = vmatprep.subr.bf16.mxu0 0
        %829 = vmatpush1.bf16.xpose.msra.mxu0 0
        %830 = vmatprep.subr.bf16.mxu0 0
        %831 = vmatpush1.bf16.xpose.msra.mxu0 0
        %832 = vmatprep.mubr.bf16.mxu0 0
        %833 = vmatmul.mubr.bf16.gmra.mrb[0].mxu0 %v795
        %v834 = vpop.f32.mrb[0].mxu0
        %v835 = vadd.f32 0.0, %v834
        %v836 = vpop.f32.mrb[0].mxu0
        %v837 = vpop.f32.mrb[0].mxu0
        %v838 = vadd.f32 0.0, %v837
        %v839 = vpop.f32.mrb[0].mxu0
        %840 = vdwg.mxu0
        %s841 = sld [smem:[#allocation9]]
        %842 = vset.pattern.permute.xlu0 64
        %843 = vperm.xlu0 %842, %v747
        %v844 = vpop.permute.xlu0 %843
        %846 = vset.pattern.permute.xlu0 64
        %847 = vperm.xlu0 %846, %v748
        %v848 = vpop.permute.xlu0 %847
        %v850 = vlaneseq
        %v851 = vshrl.u32 %v850, 7
        %v852 = vsub.s32 0, %v851
        %v853 = vrot.slane %v773, %v852
        %v854 = vsub.f32 %v844, %v853
        %v855 = vsub.f32 %v848, %v853
        %v856 = vstv %s841
        %v857 = vmul.f32 %v856, %v854
        %v858 = vmul.f32 %v856, %v855
        %v859 = vsel %vm656, %v857, -1e+30
        %v860 = vsel %vm657, %v858, -1e+30
        %v861 = vmul.f32 %v859, 1.442695
        %v862 = vpow.pop %v861
        %v863 = vmul.f32 %v860, 1.442695
        %v864 = vpow.pop %v863
        %v865 = vmul.f32 %v835, %v862
        %v866 = vmul.f32 %v838, %v864
        %v867 = vpack.c.bf16 %v866, %v865
        %868 = vset.pattern.permute.xlu0 64
        %869 = vperm.xlu0 %868, %v647
        %v870 = vpop.permute.xlu0 %869
        %872 = vset.pattern.permute.xlu0 64
        %873 = vperm.xlu0 %872, %v648
        %v874 = vpop.permute.xlu0 %873
        %v876 = vmul.f32 %v494, %v870
        %v877 = vmul.f32 %v498, %v874
        %v878 = vpack.c.bf16 %v877, %v876
        %vm879 = vcmask 130048
        %v881 = vsel %vm879, %v867, 0
        %883 = vmatprep.subr.bf16.mxu0 0
        %884 = vmatpush1.bf16.msra.mxu0 %v878
        %885 = vmatprep.subr.bf16.mxu0 0
        %886 = vmatpush1.bf16.msra.mxu0 0
        %887 = vmatprep.subr.bf16.mxu0 0
        %888 = vmatpush1.bf16.msra.mxu0 0
        %889 = vmatprep.subr.bf16.mxu0 0
        %890 = vmatpush1.bf16.msra.mxu0 0
        %891 = vmatprep.subr.bf16.mxu0 0
        %892 = vmatpush1.bf16.msra.mxu0 0
        %893 = vmatprep.subr.bf16.mxu0 0
        %894 = vmatpush1.bf16.msra.mxu0 0
        %895 = vmatprep.subr.bf16.mxu0 0
        %896 = vmatpush1.bf16.msra.mxu0 0
        %897 = vmatprep.subr.bf16.mxu0 0
        %898 = vmatpush1.bf16.msra.mxu0 0
        %899 = vmatprep.subr.bf16.mxu0 0
        %900 = vmatpush1.bf16.msra.mxu0 0
        %901 = vmatprep.subr.bf16.mxu0 0
        %902 = vmatpush1.bf16.msra.mxu0 0
        %903 = vmatprep.subr.bf16.mxu0 0
        %904 = vmatpush1.bf16.msra.mxu0 0
        %905 = vmatprep.subr.bf16.mxu0 0
        %906 = vmatpush1.bf16.msra.mxu0 0
        %907 = vmatprep.subr.bf16.mxu0 0
        %908 = vmatpush1.bf16.msra.mxu0 0
        %909 = vmatprep.subr.bf16.mxu0 0
        %910 = vmatpush1.bf16.msra.mxu0 0
        %911 = vmatprep.subr.bf16.mxu0 0
        %912 = vmatpush1.bf16.msra.mxu0 0
        %913 = vmatprep.subr.bf16.mxu0 0
        %914 = vmatpush1.bf16.msra.mxu0 0
        %915 = vmatprep.mubr.bf16.mxu0 0
        %916 = vmatmul.mubr.bf16.gmra.mrb[0].mxu0 %v881
        %v917 = vpop.f32.mrb[0].mxu0
        %v918 = vadd.f32 0.0, %v917
        %v919 = vpop.f32.mrb[0].mxu0
        %v920 = vpop.f32.mrb[0].mxu0
        %v921 = vadd.f32 0.0, %v920
        %v922 = vpop.f32.mrb[0].mxu0
        %923 = vdwg.mxu0
        %s924 = sld [smem:[#allocation9 + $0x1]]
        %925 = vset.pattern.permute.xlu0 65
        %926 = vperm.xlu0 %925, %v747
        %v927 = vpop.permute.xlu0 %926
        %929 = vset.pattern.permute.xlu0 65
        %930 = vperm.xlu0 %929, %v748
        %v931 = vpop.permute.xlu0 %930
        %v933 = vlaneseq
        %v934 = vshrl.u32 %v933, 7
        %v935 = vsub.s32 1, %v934
        %v936 = vrot.slane %v773, %v935
        %v937 = vsub.f32 %v927, %v936
        %v938 = vsub.f32 %v931, %v936
        %v939 = vstv %s924
        %v940 = vmul.f32 %v939, %v937
        %v941 = vmul.f32 %v939, %v938
        %v942 = vsel %vm656, %v940, -1e+30
        %v943 = vsel %vm657, %v941, -1e+30
        %v944 = vmul.f32 %v942, 1.442695
        %v945 = vpow.pop %v944
        %v946 = vmul.f32 %v943, 1.442695
        %v947 = vpow.pop %v946
        %v948 = vmul.f32 %v835, %v945
        %v949 = vmul.f32 %v838, %v947
        %v950 = vpack.c.bf16 %v949, %v948
        %951 = vset.pattern.permute.xlu0 65
        %952 = vperm.xlu0 %951, %v647
        %v953 = vpop.permute.xlu0 %952
        %955 = vset.pattern.permute.xlu0 65
        %956 = vperm.xlu0 %955, %v648
        %v957 = vpop.permute.xlu0 %956
        %v959 = vmul.f32 %v494, %v953
        %v960 = vmul.f32 %v498, %v957
        %v961 = vpack.c.bf16 %v960, %v959
        %963 = vrot.lane.b32.xlu0 %v961, 96
        %v964 = vpop.permute.xlu0 %963
        %v967 = vsel %vm879, %v950, 0
        %969 = vmatprep.subr.bf16.mxu0 0
        %970 = vmatpush1.bf16.msra.mxu0 %v964
        %971 = vmatprep.subr.bf16.mxu0 0
        %972 = vmatpush1.bf16.msra.mxu0 0
        %973 = vmatprep.subr.bf16.mxu0 0
        %974 = vmatpush1.bf16.msra.mxu0 0
        %975 = vmatprep.subr.bf16.mxu0 0
        %976 = vmatpush1.bf16.msra.mxu0 0
        %977 = vmatprep.subr.bf16.mxu0 0
        %978 = vmatpush1.bf16.msra.mxu0 0
        %979 = vmatprep.subr.bf16.mxu0 0
        %980 = vmatpush1.bf16.msra.mxu0 0
        %981 = vmatprep.subr.bf16.mxu0 0
        %982 = vmatpush1.bf16.msra.mxu0 0
        %983 = vmatprep.subr.bf16.mxu0 0
        %984 = vmatpush1.bf16.msra.mxu0 0
        %985 = vmatprep.subr.bf16.mxu0 0
        %986 = vmatpush1.bf16.msra.mxu0 0
        %987 = vmatprep.subr.bf16.mxu0 0
        %988 = vmatpush1.bf16.msra.mxu0 0
        %989 = vmatprep.subr.bf16.mxu0 0
        %990 = vmatpush1.bf16.msra.mxu0 0
        %991 = vmatprep.subr.bf16.mxu0 0
        %992 = vmatpush1.bf16.msra.mxu0 0
        %993 = vmatprep.subr.bf16.mxu0 0
        %994 = vmatpush1.bf16.msra.mxu0 0
        %995 = vmatprep.subr.bf16.mxu0 0
        %996 = vmatpush1.bf16.msra.mxu0 0
        %997 = vmatprep.subr.bf16.mxu0 0
        %998 = vmatpush1.bf16.msra.mxu0 0
        %999 = vmatprep.subr.bf16.mxu0 0
        %1000 = vmatpush1.bf16.msra.mxu0 0
        %1001 = vmatprep.mubr.bf16.mxu0 0
        %1002 = vmatmul.mubr.bf16.gmra.mrb[0].mxu0 %v967
        %v1003 = vpop.f32.mrb[0].mxu0
        %v1004 = vadd.f32 0.0, %v1003
        %v1005 = vpop.f32.mrb[0].mxu0
        %v1006 = vpop.f32.mrb[0].mxu0
        %v1007 = vadd.f32 0.0, %v1006
        %v1008 = vpop.f32.mrb[0].mxu0
        %1009 = vdwg.mxu0
        %s1010 = sld [smem:[#allocation9 + $0x2]]
        %1011 = vset.pattern.permute.xlu0 66
        %1012 = vperm.xlu0 %1011, %v747
        %v1013 = vpop.permute.xlu0 %1012
        %1015 = vset.pattern.permute.xlu0 66
        %1016 = vperm.xlu0 %1015, %v748
        %v1017 = vpop.permute.xlu0 %1016
        %v1019 = vlaneseq
        %v1020 = vshrl.u32 %v1019, 7
        %v1021 = vsub.s32 2, %v1020
        %v1022 = vrot.slane %v773, %v1021
        %v1023 = vsub.f32 %v1013, %v1022
        %v1024 = vsub.f32 %v1017, %v1022
        %v1025 = vstv %s1010
        %v1026 = vmul.f32 %v1025, %v1023
        %v1027 = vmul.f32 %v1025, %v1024
        %v1028 = vsel %vm656, %v1026, -1e+30
        %v1029 = vsel %vm657, %v1027, -1e+30
        %v1030 = vmul.f32 %v1028, 1.442695
        %v1031 = vpow.pop %v1030
        %v1032 = vmul.f32 %v1029, 1.442695
        %v1033 = vpow.pop %v1032
        %v1034 = vmul.f32 %v835, %v1031
        %v1035 = vmul.f32 %v838, %v1033
        %v1036 = vpack.c.bf16 %v1035, %v1034
        %1037 = vset.pattern.permute.xlu0 66
        %1038 = vperm.xlu0 %1037, %v647
        %v1039 = vpop.permute.xlu0 %1038
        %1041 = vset.pattern.permute.xlu0 66
        %1042 = vperm.xlu0 %1041, %v648
        %v1043 = vpop.permute.xlu0 %1042
        %v1045 = vmul.f32 %v494, %v1039
        %v1046 = vmul.f32 %v498, %v1043
        %v1047 = vpack.c.bf16 %v1046, %v1045
        %1049 = vrot.lane.b32.xlu0 %v1047, 64
        %v1050 = vpop.permute.xlu0 %1049
        %v1053 = vsel %vm879, %v1036, 0
        %1055 = vmatprep.subr.bf16.mxu0 0
        %1056 = vmatpush1.bf16.msra.mxu0 %v1050
        %1057 = vmatprep.subr.bf16.mxu0 0
        %1058 = vmatpush1.bf16.msra.mxu0 0
        %1059 = vmatprep.subr.bf16.mxu0 0
        %1060 = vmatpush1.bf16.msra.mxu0 0
        %1061 = vmatprep.subr.bf16.mxu0 0
        %1062 = vmatpush1.bf16.msra.mxu0 0
        %1063 = vmatprep.subr.bf16.mxu0 0
        %1064 = vmatpush1.bf16.msra.mxu0 0
        %1065 = vmatprep.subr.bf16.mxu0 0
        %1066 = vmatpush1.bf16.msra.mxu0 0
        %1067 = vmatprep.subr.bf16.mxu0 0
        %1068 = vmatpush1.bf16.msra.mxu0 0
        %1069 = vmatprep.subr.bf16.mxu0 0
        %1070 = vmatpush1.bf16.msra.mxu0 0
        %1071 = vmatprep.subr.bf16.mxu0 0
        %1072 = vmatpush1.bf16.msra.mxu0 0
        %1073 = vmatprep.subr.bf16.mxu0 0
        %1074 = vmatpush1.bf16.msra.mxu0 0
        %1075 = vmatprep.subr.bf16.mxu0 0
        %1076 = vmatpush1.bf16.msra.mxu0 0
        %1077 = vmatprep.subr.bf16.mxu0 0
        %1078 = vmatpush1.bf16.msra.mxu0 0
        %1079 = vmatprep.subr.bf16.mxu0 0
        %1080 = vmatpush1.bf16.msra.mxu0 0
        %1081 = vmatprep.subr.bf16.mxu0 0
        %1082 = vmatpush1.bf16.msra.mxu0 0
        %1083 = vmatprep.subr.bf16.mxu0 0
        %1084 = vmatpush1.bf16.msra.mxu0 0
        %1085 = vmatprep.subr.bf16.mxu0 0
        %1086 = vmatpush1.bf16.msra.mxu0 0
        %1087 = vmatprep.mubr.bf16.mxu0 0
        %1088 = vmatmul.mubr.bf16.gmra.mrb[0].mxu0 %v1053
        %v1089 = vpop.f32.mrb[0].mxu0
        %v1090 = vadd.f32 0.0, %v1089
        %v1091 = vpop.f32.mrb[0].mxu0
        %v1092 = vpop.f32.mrb[0].mxu0
        %v1093 = vadd.f32 0.0, %v1092
        %v1094 = vpop.f32.mrb[0].mxu0
        %1095 = vdwg.mxu0
        %s1096 = sld [smem:[#allocation9 + $0x3]]
        %1097 = vset.pattern.permute.xlu0 67
        %1098 = vperm.xlu0 %1097, %v747
        %v1099 = vpop.permute.xlu0 %1098
        %1101 = vset.pattern.permute.xlu0 67
        %1102 = vperm.xlu0 %1101, %v748
        %v1103 = vpop.permute.xlu0 %1102
        %v1105 = vlaneseq
        %v1106 = vshrl.u32 %v1105, 7
        %v1107 = vsub.s32 3, %v1106
        %v1108 = vrot.slane %v773, %v1107
        %v1109 = vsub.f32 %v1099, %v1108
        %v1110 = vsub.f32 %v1103, %v1108
        %v1111 = vstv %s1096
        %v1112 = vmul.f32 %v1111, %v1109
        %v1113 = vmul.f32 %v1111, %v1110
        %v1114 = vsel %vm656, %v1112, -1e+30
        %v1115 = vsel %vm657, %v1113, -1e+30
        %v1116 = vmul.f32 %v1114, 1.442695
        %v1117 = vpow.pop %v1116
        %v1118 = vmul.f32 %v1115, 1.442695
        %v1119 = vpow.pop %v1118
        %v1120 = vmul.f32 %v835, %v1117
        %v1121 = vmul.f32 %v838, %v1119
        %v1122 = vpack.c.bf16 %v1121, %v1120
        %1123 = vset.pattern.permute.xlu0 67
        %1124 = vperm.xlu0 %1123, %v647
        %v1125 = vpop.permute.xlu0 %1124
        %1127 = vset.pattern.permute.xlu0 67
        %1128 = vperm.xlu0 %1127, %v648
        %v1129 = vpop.permute.xlu0 %1128
        %v1131 = vmul.f32 %v494, %v1125
        %v1132 = vmul.f32 %v498, %v1129
        %v1133 = vpack.c.bf16 %v1132, %v1131
        %1135 = vrot.lane.b32.xlu0 %v1133, 32
        %v1136 = vpop.permute.xlu0 %1135
        %v1139 = vsel %vm879, %v1122, 0
        %1141 = vmatprep.subr.bf16.mxu0 0
        %1142 = vmatpush1.bf16.msra.mxu0 %v1136
        %1143 = vmatprep.subr.bf16.mxu0 0
        %1144 = vmatpush1.bf16.msra.mxu0 0
        %1145 = vmatprep.subr.bf16.mxu0 0
        %1146 = vmatpush1.bf16.msra.mxu0 0
        %1147 = vmatprep.subr.bf16.mxu0 0
        %1148 = vmatpush1.bf16.msra.mxu0 0
        %1149 = vmatprep.subr.bf16.mxu0 0
        %1150 = vmatpush1.bf16.msra.mxu0 0
        %1151 = vmatprep.subr.bf16.mxu0 0
        %1152 = vmatpush1.bf16.msra.mxu0 0
        %1153 = vmatprep.subr.bf16.mxu0 0
        %1154 = vmatpush1.bf16.msra.mxu0 0
        %1155 = vmatprep.subr.bf16.mxu0 0
        %1156 = vmatpush1.bf16.msra.mxu0 0
        %1157 = vmatprep.subr.bf16.mxu0 0
        %1158 = vmatpush1.bf16.msra.mxu0 0
        %1159 = vmatprep.subr.bf16.mxu0 0
        %1160 = vmatpush1.bf16.msra.mxu0 0
        %1161 = vmatprep.subr.bf16.mxu0 0
        %1162 = vmatpush1.bf16.msra.mxu0 0
        %1163 = vmatprep.subr.bf16.mxu0 0
        %1164 = vmatpush1.bf16.msra.mxu0 0
        %1165 = vmatprep.subr.bf16.mxu0 0
        %1166 = vmatpush1.bf16.msra.mxu0 0
        %1167 = vmatprep.subr.bf16.mxu0 0
        %1168 = vmatpush1.bf16.msra.mxu0 0
        %1169 = vmatprep.subr.bf16.mxu0 0
        %1170 = vmatpush1.bf16.msra.mxu0 0
        %1171 = vmatprep.subr.bf16.mxu0 0
        %1172 = vmatpush1.bf16.msra.mxu0 0
        %1173 = vmatprep.mubr.bf16.mxu0 0
        %1174 = vmatmul.mubr.bf16.gmra.mrb[0].mxu0 %v1139
        %v1175 = vpop.f32.mrb[0].mxu0
        %v1176 = vadd.f32 0.0, %v1175
        %v1177 = vpop.f32.mrb[0].mxu0
        %v1178 = vpop.f32.mrb[0].mxu0
        %v1179 = vadd.f32 0.0, %v1178
        %v1180 = vpop.f32.mrb[0].mxu0
        %1181 = vdwg.mxu0
        %1184 = vrot.lane.b32.xlu0 %v1004, 32
        %v1185 = vpop.permute.xlu0 %1184
        %1186 = vrot.lane.b32.xlu0 %v1007, 32
        %v1187 = vpop.permute.xlu0 %1186
        %1192 = vrot.lane.b32.xlu0 %v1090, 64
        %v1193 = vpop.permute.xlu0 %1192
        %1194 = vrot.lane.b32.xlu0 %v1093, 64
        %v1195 = vpop.permute.xlu0 %1194
        %1200 = vrot.lane.b32.xlu0 %v1176, 96
        %v1201 = vpop.permute.xlu0 %1200
        %1202 = vrot.lane.b32.xlu0 %v1179, 96
        %v1203 = vpop.permute.xlu0 %1202
        %v1206 = vsel %vm793, %v918, %v1185
        %v1207 = vsel %vm793, %v921, %v1187
        %v1208 = vsel %vm360, %v1206, %v1193
        %v1209 = vsel %vm360, %v1207, %v1195
        %vm1210 = vcmask 785408
        %v1211 = vsel %vm1210, %v1208, %v1201
        %v1212 = vsel %vm1210, %v1209, %v1203
        %1215 = vrot.lane.b32.xlu0 %v649, 64
        %v1216 = vpop.permute.xlu0 %1215
        %1217 = vrot.lane.b32.xlu0 %v650, 64
        %v1218 = vpop.permute.xlu0 %1217
        %1221 = vst.msk [vmem:[#allocation2 + $0x10] sm:$0xff] %vm658, %v1216
        %1222 = vst.msk [vmem:[#allocation2 + $0x18] sm:$0xff] %vm658, %v1218
        %v1223 = vld [vmem:[#allocation2 + $0xf] sm:$0xff]
        %v1224 = vld [vmem:[#allocation2 + $0x17] sm:$0xff]
        %1227 = vrot.lane.b32.xlu0 %v1223, 64
        %v1228 = vpop.permute.xlu0 %1227
        %1229 = vrot.lane.b32.xlu0 %v1224, 64
        %v1230 = vpop.permute.xlu0 %1229
        %v1233 = vadd.f32 %v649, %v1228
        %v1234 = vadd.f32 %v650, %v1230
        %1237 = vrot.lane.b32.xlu0 %v1233, 64
        %v1238 = vpop.permute.xlu0 %1237
        %1239 = vrot.lane.b32.xlu0 %v1234, 64
        %v1240 = vpop.permute.xlu0 %1239
        %1243 = vst.msk [vmem:[#allocation2 + $0x10] sm:$0xff] %vm658, %v1238
        %1244 = vst.msk [vmem:[#allocation2 + $0x18] sm:$0xff] %vm658, %v1240
        %v1245 = vld [vmem:[#allocation2 + $0xe] sm:$0xff]
        %v1246 = vld [vmem:[#allocation2 + $0x16] sm:$0xff]
        %1249 = vrot.lane.b32.xlu0 %v1245, 64
        %v1250 = vpop.permute.xlu0 %1249
        %1251 = vrot.lane.b32.xlu0 %v1246, 64
        %v1252 = vpop.permute.xlu0 %1251
        %v1255 = vadd.f32 %v1233, %v1250
        %v1256 = vadd.f32 %v1234, %v1252
        %1259 = vrot.lane.b32.xlu0 %v1255, 64
        %v1260 = vpop.permute.xlu0 %1259
        %1261 = vrot.lane.b32.xlu0 %v1256, 64
        %v1262 = vpop.permute.xlu0 %1261
        %1265 = vst.msk [vmem:[#allocation2 + $0x10] sm:$0xff] %vm658, %v1260
        %1266 = vst.msk [vmem:[#allocation2 + $0x18] sm:$0xff] %vm658, %v1262
        %v1267 = vld [vmem:[#allocation2 + $0xc] sm:$0xff]
        %v1268 = vld [vmem:[#allocation2 + $0x14] sm:$0xff]
        %1271 = vrot.lane.b32.xlu0 %v1267, 64
        %v1272 = vpop.permute.xlu0 %1271
        %1273 = vrot.lane.b32.xlu0 %v1268, 64
        %v1274 = vpop.permute.xlu0 %1273
        %v1277 = vadd.f32 %v1255, %v1272
        %v1278 = vadd.f32 %v1256, %v1274
        %1281 = vrot.lane.b32.xlu0 %v1277, 64
        %v1282 = vpop.permute.xlu0 %1281
        %1283 = vrot.lane.b32.xlu0 %v1278, 64
        %v1284 = vpop.permute.xlu0 %1283
        %1287 = vst.msk [vmem:[#allocation2 + $0x10] sm:$0xff] %vm658, %v1282
        %1288 = vst.msk [vmem:[#allocation2 + $0x18] sm:$0xff] %vm658, %v1284
        %v1289 = vld [vmem:[#allocation2 + $0x8] sm:$0xff]
        %v1290 = vld [vmem:[#allocation2 + $0x10] sm:$0xff]
        %1293 = vrot.lane.b32.xlu0 %v1289, 64
        %v1294 = vpop.permute.xlu0 %1293
        %1295 = vrot.lane.b32.xlu0 %v1290, 64
        %v1296 = vpop.permute.xlu0 %1295
        %v1299 = vadd.f32 %v1277, %v1294
        %v1300 = vadd.f32 %v1278, %v1296
        %1303 = vrot.lane.b32.xlu0 %v1299, 64
        %v1304 = vpop.permute.xlu0 %1303
        %1305 = vrot.lane.b32.xlu0 %v1300, 64
        %v1306 = vpop.permute.xlu0 %1305
        %1309 = vxpose.xlu0.b32.start [1/16] %v1304, 128
        %1310 = vxpose.xlu0.b32.cont [2/16] %v1306, 128
        %1311 = vxpose.xlu0.b32.cont [3/16] 0.0, 128
        %1312 = vxpose.xlu0.b32.cont [4/16] 0.0, 128
        %1313 = vxpose.xlu0.b32.cont [5/16] 0.0, 128
        %1314 = vxpose.xlu0.b32.cont [6/16] 0.0, 128
        %1315 = vxpose.xlu0.b32.cont [7/16] 0.0, 128
        %1316 = vxpose.xlu0.b32.cont [8/16] 0.0, 128
        %1317 = vxpose.xlu0.b32.cont [9/16] 0.0, 128
        %1318 = vxpose.xlu0.b32.cont [10/16] 0.0, 128
        %1319 = vxpose.xlu0.b32.cont [11/16] 0.0, 128
        %1320 = vxpose.xlu0.b32.cont [12/16] 0.0, 128
        %1321 = vxpose.xlu0.b32.cont [13/16] 0.0, 128
        %1322 = vxpose.xlu0.b32.cont [14/16] 0.0, 128
        %1323 = vxpose.xlu0.b32.cont [15/16] 0.0, 128
        %1324 = vxpose.xlu0.b32.end [16/16] 0.0, 128
        %v1325 = vpop.trf.xlu0
        %v1326 = vpop.trf.xlu0
        %v1327 = vpop.trf.xlu0
        %v1328 = vpop.trf.xlu0
        %v1329 = vpop.trf.xlu0
        %v1330 = vpop.trf.xlu0
        %v1331 = vpop.trf.xlu0
        %v1332 = vpop.trf.xlu0
        %v1333 = vpop.trf.xlu0
        %v1334 = vpop.trf.xlu0
        %v1335 = vpop.trf.xlu0
        %v1336 = vpop.trf.xlu0
        %v1337 = vpop.trf.xlu0
        %v1338 = vpop.trf.xlu0
        %v1339 = vpop.trf.xlu0
        %v1340 = vpop.trf.xlu0
        %v1341 = vpack.c.bf16 %v612, %v607
        %1343 = vrot.lane.b32.xlu0 %v1341, 96
        %v1344 = vpop.permute.xlu0 %1343
        %v1346 = vsel %vm793, %v1344, 0
        %v1349 = vsel %vm793, %v1341, 0
        %1351 = vmatprep.subr.bf16.mxu0 0
        %1352 = vmatpush1.bf16.xpose.msra.mxu0 %v1349
        %1353 = vmatprep.subr.bf16.mxu0 0
        %1354 = vmatpush1.bf16.xpose.msra.mxu0 0
        %1355 = vmatprep.subr.bf16.mxu0 0
        %1356 = vmatpush1.bf16.xpose.msra.mxu0 0
        %1357 = vmatprep.subr.bf16.mxu0 0
        %1358 = vmatpush1.bf16.xpose.msra.mxu0 0
        %1359 = vmatprep.subr.bf16.mxu0 0
        %1360 = vmatpush1.bf16.xpose.msra.mxu0 0
        %1361 = vmatprep.subr.bf16.mxu0 0
        %1362 = vmatpush1.bf16.xpose.msra.mxu0 0
        %1363 = vmatprep.subr.bf16.mxu0 0
        %1364 = vmatpush1.bf16.xpose.msra.mxu0 0
        %1365 = vmatprep.subr.bf16.mxu0 0
        %1366 = vmatpush1.bf16.xpose.msra.mxu0 0
        %1367 = vmatprep.subr.bf16.mxu0 0
        %1368 = vmatpush1.bf16.xpose.msra.mxu0 0
        %1369 = vmatprep.subr.bf16.mxu0 0
        %1370 = vmatpush1.bf16.xpose.msra.mxu0 0
        %1371 = vmatprep.subr.bf16.mxu0 0
        %1372 = vmatpush1.bf16.xpose.msra.mxu0 0
        %1373 = vmatprep.subr.bf16.mxu0 0
        %1374 = vmatpush1.bf16.xpose.msra.mxu0 0
        %1375 = vmatprep.subr.bf16.mxu0 0
        %1376 = vmatpush1.bf16.xpose.msra.mxu0 0
        %1377 = vmatprep.subr.bf16.mxu0 0
        %1378 = vmatpush1.bf16.xpose.msra.mxu0 0
        %1379 = vmatprep.subr.bf16.mxu0 0
        %1380 = vmatpush1.bf16.xpose.msra.mxu0 0
        %1381 = vmatprep.subr.bf16.mxu0 0
        %1382 = vmatpush1.bf16.xpose.msra.mxu0 0
        %1383 = vmatprep.mubr.bf16.mxu0 0
        %1384 = vmatmul.mubr.bf16.gmra.mrb[0].mxu0 %v1346
        %v1385 = vpop.f32.mrb[0].mxu0
        %v1386 = vadd.f32 0.0, %v1385
        %v1387 = vpop.f32.mrb[0].mxu0
        %v1388 = vpop.f32.mrb[0].mxu0
        %v1389 = vadd.f32 0.0, %v1388
        %v1390 = vpop.f32.mrb[0].mxu0
        %1391 = vdwg.mxu0
        %s1392 = sld [smem:[#allocation9]]
        %1393 = vset.pattern.permute.xlu0 64
        %1394 = vperm.xlu0 %1393, %v1299
        %v1395 = vpop.permute.xlu0 %1394
        %1397 = vset.pattern.permute.xlu0 64
        %1398 = vperm.xlu0 %1397, %v1300
        %v1399 = vpop.permute.xlu0 %1398
        %v1401 = vlaneseq
        %v1402 = vshrl.u32 %v1401, 7
        %v1403 = vsub.s32 0, %v1402
        %v1404 = vrot.slane %v1325, %v1403
        %v1405 = vsub.f32 %v1395, %v1404
        %v1406 = vsub.f32 %v1399, %v1404
        %v1407 = vstv %s1392
        %v1408 = vmul.f32 %v1407, %v1405
        %v1409 = vmul.f32 %v1407, %v1406
        %v1410 = vsel %vm656, %v1408, -1e+30
        %v1411 = vsel %vm657, %v1409, -1e+30
        %v1412 = vmul.f32 %v1410, 1.442695
        %v1413 = vpow.pop %v1412
        %v1414 = vmul.f32 %v1411, 1.442695
        %v1415 = vpow.pop %v1414
        %v1416 = vmul.f32 %v1386, %v1413
        %v1417 = vmul.f32 %v1389, %v1415
        %v1418 = vpack.c.bf16 %v1417, %v1416
        %1419 = vset.pattern.permute.xlu0 64
        %1420 = vperm.xlu0 %1419, %v649
        %v1421 = vpop.permute.xlu0 %1420
        %1423 = vset.pattern.permute.xlu0 64
        %1424 = vperm.xlu0 %1423, %v650
        %v1425 = vpop.permute.xlu0 %1424
        %v1427 = vmul.f32 %v504, %v1421
        %v1428 = vmul.f32 %v508, %v1425
        %v1429 = vpack.c.bf16 %v1428, %v1427
        %v1431 = vsel %vm879, %v1418, 0
        %1433 = vmatprep.subr.bf16.mxu0 0
        %1434 = vmatpush1.bf16.msra.mxu0 %v1429
        %1435 = vmatprep.subr.bf16.mxu0 0
        %1436 = vmatpush1.bf16.msra.mxu0 0
        %1437 = vmatprep.subr.bf16.mxu0 0
        %1438 = vmatpush1.bf16.msra.mxu0 0
        %1439 = vmatprep.subr.bf16.mxu0 0
        %1440 = vmatpush1.bf16.msra.mxu0 0
        %1441 = vmatprep.subr.bf16.mxu0 0
        %1442 = vmatpush1.bf16.msra.mxu0 0
        %1443 = vmatprep.subr.bf16.mxu0 0
        %1444 = vmatpush1.bf16.msra.mxu0 0
        %1445 = vmatprep.subr.bf16.mxu0 0
        %1446 = vmatpush1.bf16.msra.mxu0 0
        %1447 = vmatprep.subr.bf16.mxu0 0
        %1448 = vmatpush1.bf16.msra.mxu0 0
        %1449 = vmatprep.subr.bf16.mxu0 0
        %1450 = vmatpush1.bf16.msra.mxu0 0
        %1451 = vmatprep.subr.bf16.mxu0 0
        %1452 = vmatpush1.bf16.msra.mxu0 0
        %1453 = vmatprep.subr.bf16.mxu0 0
        %1454 = vmatpush1.bf16.msra.mxu0 0
        %1455 = vmatprep.subr.bf16.mxu0 0
        %1456 = vmatpush1.bf16.msra.mxu0 0
        %1457 = vmatprep.subr.bf16.mxu0 0
        %1458 = vmatpush1.bf16.msra.mxu0 0
        %1459 = vmatprep.subr.bf16.mxu0 0
        %1460 = vmatpush1.bf16.msra.mxu0 0
        %1461 = vmatprep.subr.bf16.mxu0 0
        %1462 = vmatpush1.bf16.msra.mxu0 0
        %1463 = vmatprep.subr.bf16.mxu0 0
        %1464 = vmatpush1.bf16.msra.mxu0 0
        %1465 = vmatprep.mubr.bf16.mxu0 0
        %1466 = vmatmul.mubr.bf16.gmra.mrb[0].mxu0 %v1431
        %v1467 = vpop.f32.mrb[0].mxu0
        %v1468 = vadd.f32 0.0, %v1467
        %v1469 = vpop.f32.mrb[0].mxu0
        %v1470 = vpop.f32.mrb[0].mxu0
        %v1471 = vadd.f32 0.0, %v1470
        %v1472 = vpop.f32.mrb[0].mxu0
        %1473 = vdwg.mxu0
        %s1474 = sld [smem:[#allocation9 + $0x1]]
        %1475 = vset.pattern.permute.xlu0 65
        %1476 = vperm.xlu0 %1475, %v1299
        %v1477 = vpop.permute.xlu0 %1476
        %1479 = vset.pattern.permute.xlu0 65
        %1480 = vperm.xlu0 %1479, %v1300
        %v1481 = vpop.permute.xlu0 %1480
        %v1483 = vlaneseq
        %v1484 = vshrl.u32 %v1483, 7
        %v1485 = vsub.s32 1, %v1484
        %v1486 = vrot.slane %v1325, %v1485
        %v1487 = vsub.f32 %v1477, %v1486
        %v1488 = vsub.f32 %v1481, %v1486
        %v1489 = vstv %s1474
        %v1490 = vmul.f32 %v1489, %v1487
        %v1491 = vmul.f32 %v1489, %v1488
        %v1492 = vsel %vm656, %v1490, -1e+30
        %v1493 = vsel %vm657, %v1491, -1e+30
        %v1494 = vmul.f32 %v1492, 1.442695
        %v1495 = vpow.pop %v1494
        %v1496 = vmul.f32 %v1493, 1.442695
        %v1497 = vpow.pop %v1496
        %v1498 = vmul.f32 %v1386, %v1495
        %v1499 = vmul.f32 %v1389, %v1497
        %v1500 = vpack.c.bf16 %v1499, %v1498
        %1501 = vset.pattern.permute.xlu0 65
        %1502 = vperm.xlu0 %1501, %v649
        %v1503 = vpop.permute.xlu0 %1502
        %1505 = vset.pattern.permute.xlu0 65
        %1506 = vperm.xlu0 %1505, %v650
        %v1507 = vpop.permute.xlu0 %1506
        %v1509 = vmul.f32 %v504, %v1503
        %v1510 = vmul.f32 %v508, %v1507
        %v1511 = vpack.c.bf16 %v1510, %v1509
        %1513 = vrot.lane.b32.xlu0 %v1511, 96
        %v1514 = vpop.permute.xlu0 %1513
        %v1517 = vsel %vm879, %v1500, 0
        %1519 = vmatprep.subr.bf16.mxu0 0
        %1520 = vmatpush1.bf16.msra.mxu0 %v1514
        %1521 = vmatprep.subr.bf16.mxu0 0
        %1522 = vmatpush1.bf16.msra.mxu0 0
        %1523 = vmatprep.subr.bf16.mxu0 0
        %1524 = vmatpush1.bf16.msra.mxu0 0
        %1525 = vmatprep.subr.bf16.mxu0 0
        %1526 = vmatpush1.bf16.msra.mxu0 0
        %1527 = vmatprep.subr.bf16.mxu0 0
        %1528 = vmatpush1.bf16.msra.mxu0 0
        %1529 = vmatprep.subr.bf16.mxu0 0
        %1530 = vmatpush1.bf16.msra.mxu0 0
        %1531 = vmatprep.subr.bf16.mxu0 0
        %1532 = vmatpush1.bf16.msra.mxu0 0
        %1533 = vmatprep.subr.bf16.mxu0 0
        %1534 = vmatpush1.bf16.msra.mxu0 0
        %1535 = vmatprep.subr.bf16.mxu0 0
        %1536 = vmatpush1.bf16.msra.mxu0 0
        %1537 = vmatprep.subr.bf16.mxu0 0
        %1538 = vmatpush1.bf16.msra.mxu0 0
        %1539 = vmatprep.subr.bf16.mxu0 0
        %1540 = vmatpush1.bf16.msra.mxu0 0
        %1541 = vmatprep.subr.bf16.mxu0 0
        %1542 = vmatpush1.bf16.msra.mxu0 0
        %1543 = vmatprep.subr.bf16.mxu0 0
        %1544 = vmatpush1.bf16.msra.mxu0 0
        %1545 = vmatprep.subr.bf16.mxu0 0
        %1546 = vmatpush1.bf16.msra.mxu0 0
        %1547 = vmatprep.subr.bf16.mxu0 0
        %1548 = vmatpush1.bf16.msra.mxu0 0
        %1549 = vmatprep.subr.bf16.mxu0 0
        %1550 = vmatpush1.bf16.msra.mxu0 0
        %1551 = vmatprep.mubr.bf16.mxu0 0
        %1552 = vmatmul.mubr.bf16.gmra.mrb[0].mxu0 %v1517
        %v1553 = vpop.f32.mrb[0].mxu0
        %v1554 = vadd.f32 0.0, %v1553
        %v1555 = vpop.f32.mrb[0].mxu0
        %v1556 = vpop.f32.mrb[0].mxu0
        %v1557 = vadd.f32 0.0, %v1556
        %v1558 = vpop.f32.mrb[0].mxu0
        %1559 = vdwg.mxu0
        %s1560 = sld [smem:[#allocation9 + $0x2]]
        %1561 = vset.pattern.permute.xlu0 66
        %1562 = vperm.xlu0 %1561, %v1299
        %v1563 = vpop.permute.xlu0 %1562
        %1565 = vset.pattern.permute.xlu0 66
        %1566 = vperm.xlu0 %1565, %v1300
        %v1567 = vpop.permute.xlu0 %1566
        %v1569 = vlaneseq
        %v1570 = vshrl.u32 %v1569, 7
        %v1571 = vsub.s32 2, %v1570
        %v1572 = vrot.slane %v1325, %v1571
        %v1573 = vsub.f32 %v1563, %v1572
        %v1574 = vsub.f32 %v1567, %v1572
        %v1575 = vstv %s1560
        %v1576 = vmul.f32 %v1575, %v1573
        %v1577 = vmul.f32 %v1575, %v1574
        %v1578 = vsel %vm656, %v1576, -1e+30
        %v1579 = vsel %vm657, %v1577, -1e+30
        %v1580 = vmul.f32 %v1578, 1.442695
        %v1581 = vpow.pop %v1580
        %v1582 = vmul.f32 %v1579, 1.442695
        %v1583 = vpow.pop %v1582
        %v1584 = vmul.f32 %v1386, %v1581
        %v1585 = vmul.f32 %v1389, %v1583
        %v1586 = vpack.c.bf16 %v1585, %v1584
        %1587 = vset.pattern.permute.xlu0 66
        %1588 = vperm.xlu0 %1587, %v649
        %v1589 = vpop.permute.xlu0 %1588
        %1591 = vset.pattern.permute.xlu0 66
        %1592 = vperm.xlu0 %1591, %v650
        %v1593 = vpop.permute.xlu0 %1592
        %v1595 = vmul.f32 %v504, %v1589
        %v1596 = vmul.f32 %v508, %v1593
        %v1597 = vpack.c.bf16 %v1596, %v1595
        %1599 = vrot.lane.b32.xlu0 %v1597, 64
        %v1600 = vpop.permute.xlu0 %1599
        %v1603 = vsel %vm879, %v1586, 0
        %1605 = vmatprep.subr.bf16.mxu0 0
        %1606 = vmatpush1.bf16.msra.mxu0 %v1600
        %1607 = vmatprep.subr.bf16.mxu0 0
        %1608 = vmatpush1.bf16.msra.mxu0 0
        %1609 = vmatprep.subr.bf16.mxu0 0
        %1610 = vmatpush1.bf16.msra.mxu0 0
        %1611 = vmatprep.subr.bf16.mxu0 0
        %1612 = vmatpush1.bf16.msra.mxu0 0
        %1613 = vmatprep.subr.bf16.mxu0 0
        %1614 = vmatpush1.bf16.msra.mxu0 0
        %1615 = vmatprep.subr.bf16.mxu0 0
        %1616 = vmatpush1.bf16.msra.mxu0 0
        %1617 = vmatprep.subr.bf16.mxu0 0
        %1618 = vmatpush1.bf16.msra.mxu0 0
        %1619 = vmatprep.subr.bf16.mxu0 0
        %1620 = vmatpush1.bf16.msra.mxu0 0
        %1621 = vmatprep.subr.bf16.mxu0 0
        %1622 = vmatpush1.bf16.msra.mxu0 0
        %1623 = vmatprep.subr.bf16.mxu0 0
        %1624 = vmatpush1.bf16.msra.mxu0 0
        %1625 = vmatprep.subr.bf16.mxu0 0
        %1626 = vmatpush1.bf16.msra.mxu0 0
        %1627 = vmatprep.subr.bf16.mxu0 0
        %1628 = vmatpush1.bf16.msra.mxu0 0
        %1629 = vmatprep.subr.bf16.mxu0 0
        %1630 = vmatpush1.bf16.msra.mxu0 0
        %1631 = vmatprep.subr.bf16.mxu0 0
        %1632 = vmatpush1.bf16.msra.mxu0 0
        %1633 = vmatprep.subr.bf16.mxu0 0
        %1634 = vmatpush1.bf16.msra.mxu0 0
        %1635 = vmatprep.subr.bf16.mxu0 0
        %1636 = vmatpush1.bf16.msra.mxu0 0
        %1637 = vmatprep.mubr.bf16.mxu0 0
        %1638 = vmatmul.mubr.bf16.gmra.mrb[0].mxu0 %v1603
        %v1639 = vpop.f32.mrb[0].mxu0
        %v1640 = vadd.f32 0.0, %v1639
        %v1641 = vpop.f32.mrb[0].mxu0
        %v1642 = vpop.f32.mrb[0].mxu0
        %v1643 = vadd.f32 0.0, %v1642
        %v1644 = vpop.f32.mrb[0].mxu0
        %1645 = vdwg.mxu0
        %s1646 = sld [smem:[#allocation9 + $0x3]]
        %1647 = vset.pattern.permute.xlu0 67
        %1648 = vperm.xlu0 %1647, %v1299
        %v1649 = vpop.permute.xlu0 %1648
        %1651 = vset.pattern.permute.xlu0 67
        %1652 = vperm.xlu0 %1651, %v1300
        %v1653 = vpop.permute.xlu0 %1652
        %v1655 = vlaneseq
        %v1656 = vshrl.u32 %v1655, 7
        %v1657 = vsub.s32 3, %v1656
        %v1658 = vrot.slane %v1325, %v1657
        %v1659 = vsub.f32 %v1649, %v1658
        %v1660 = vsub.f32 %v1653, %v1658
        %v1661 = vstv %s1646
        %v1662 = vmul.f32 %v1661, %v1659
        %v1663 = vmul.f32 %v1661, %v1660
        %v1664 = vsel %vm656, %v1662, -1e+30
        %v1665 = vsel %vm657, %v1663, -1e+30
        %v1666 = vmul.f32 %v1664, 1.442695
        %v1667 = vpow.pop %v1666
        %v1668 = vmul.f32 %v1665, 1.442695
        %v1669 = vpow.pop %v1668
        %v1670 = vmul.f32 %v1386, %v1667
        %v1671 = vmul.f32 %v1389, %v1669
        %v1672 = vpack.c.bf16 %v1671, %v1670
        %1673 = vset.pattern.permute.xlu0 67
        %1674 = vperm.xlu0 %1673, %v649
        %v1675 = vpop.permute.xlu0 %1674
        %1677 = vset.pattern.permute.xlu0 67
        %1678 = vperm.xlu0 %1677, %v650
        %v1679 = vpop.permute.xlu0 %1678
        %v1681 = vmul.f32 %v504, %v1675
        %v1682 = vmul.f32 %v508, %v1679
        %v1683 = vpack.c.bf16 %v1682, %v1681
        %1685 = vrot.lane.b32.xlu0 %v1683, 32
        %v1686 = vpop.permute.xlu0 %1685
        %v1689 = vsel %vm879, %v1672, 0
        %1691 = vmatprep.subr.bf16.mxu0 0
        %1692 = vmatpush1.bf16.msra.mxu0 %v1686
        %1693 = vmatprep.subr.bf16.mxu0 0
        %1694 = vmatpush1.bf16.msra.mxu0 0
        %1695 = vmatprep.subr.bf16.mxu0 0
        %1696 = vmatpush1.bf16.msra.mxu0 0
        %1697 = vmatprep.subr.bf16.mxu0 0
        %1698 = vmatpush1.bf16.msra.mxu0 0
        %1699 = vmatprep.subr.bf16.mxu0 0
        %1700 = vmatpush1.bf16.msra.mxu0 0
        %1701 = vmatprep.subr.bf16.mxu0 0
        %1702 = vmatpush1.bf16.msra.mxu0 0
        %1703 = vmatprep.subr.bf16.mxu0 0
        %1704 = vmatpush1.bf16.msra.mxu0 0
        %1705 = vmatprep.subr.bf16.mxu0 0
        %1706 = vmatpush1.bf16.msra.mxu0 0
        %1707 = vmatprep.subr.bf16.mxu0 0
        %1708 = vmatpush1.bf16.msra.mxu0 0
        %1709 = vmatprep.subr.bf16.mxu0 0
        %1710 = vmatpush1.bf16.msra.mxu0 0
        %1711 = vmatprep.subr.bf16.mxu0 0
        %1712 = vmatpush1.bf16.msra.mxu0 0
        %1713 = vmatprep.subr.bf16.mxu0 0
        %1714 = vmatpush1.bf16.msra.mxu0 0
        %1715 = vmatprep.subr.bf16.mxu0 0
        %1716 = vmatpush1.bf16.msra.mxu0 0
        %1717 = vmatprep.subr.bf16.mxu0 0
        %1718 = vmatpush1.bf16.msra.mxu0 0
        %1719 = vmatprep.subr.bf16.mxu0 0
        %1720 = vmatpush1.bf16.msra.mxu0 0
        %1721 = vmatprep.subr.bf16.mxu0 0
        %1722 = vmatpush1.bf16.msra.mxu0 0
        %1723 = vmatprep.mubr.bf16.mxu0 0
        %1724 = vmatmul.mubr.bf16.gmra.mrb[0].mxu0 %v1689
        %v1725 = vpop.f32.mrb[0].mxu0
        %v1726 = vadd.f32 0.0, %v1725
        %v1727 = vpop.f32.mrb[0].mxu0
        %v1728 = vpop.f32.mrb[0].mxu0
        %v1729 = vadd.f32 0.0, %v1728
        %v1730 = vpop.f32.mrb[0].mxu0
        %1731 = vdwg.mxu0
        %1734 = vrot.lane.b32.xlu0 %v1554, 32
        %v1735 = vpop.permute.xlu0 %1734
        %1736 = vrot.lane.b32.xlu0 %v1557, 32
        %v1737 = vpop.permute.xlu0 %1736
        %1742 = vrot.lane.b32.xlu0 %v1640, 64
        %v1743 = vpop.permute.xlu0 %1742
        %1744 = vrot.lane.b32.xlu0 %v1643, 64
        %v1745 = vpop.permute.xlu0 %1744
        %1750 = vrot.lane.b32.xlu0 %v1726, 96
        %v1751 = vpop.permute.xlu0 %1750
        %1752 = vrot.lane.b32.xlu0 %v1729, 96
        %v1753 = vpop.permute.xlu0 %1752
        %v1756 = vsel %vm793, %v1468, %v1735
        %v1757 = vsel %vm793, %v1471, %v1737
        %v1758 = vsel %vm360, %v1756, %v1743
        %v1759 = vsel %vm360, %v1757, %v1745
        %v1760 = vsel %vm1210, %v1758, %v1751
        %v1761 = vsel %vm1210, %v1759, %v1753
        %v1762 = vld [vmem:[%s7] sm:$0x1]
        %v1764 = vlaneseq
        %v1765 = vshrl.u32 %v1764, 7
        %v1766 = vsub.s32 0, %v1765
        %v1767 = vrot.slane %v1762, %v1766
        %v1769 = vmul.f32 %v494, %v1767
        %v1770 = vmul.f32 %v498, %v1767
        %v1771 = vmul.f32 %v504, %v1767
        %v1772 = vmul.f32 %v508, %v1767
        %v1773 = vadd.f32 %v1211, %v1769
        %v1774 = vadd.f32 %v1212, %v1770
        %v1775 = vadd.f32 %v1760, %v1771
        %v1776 = vadd.f32 %v1761, %v1772
        %v1777 = vsub.f32 0.0, %v492
        %v1778 = vsub.f32 0.0, %v496
        %v1779 = vsub.f32 0.0, %v502
        %v1780 = vsub.f32 0.0, %v506
        %v1781 = vmul.f32 %v1777, 1.442695
        %v1782 = vpow.pop %v1781
        %v1783 = vmul.f32 %v1778, 1.442695
        %v1784 = vpow.pop %v1783
        %v1785 = vmul.f32 %v1779, 1.442695
        %v1786 = vpow.pop %v1785
        %v1787 = vmul.f32 %v1780, 1.442695
        %v1788 = vpow.pop %v1787
        %v1789 = vadd.f32 %v1782, 1.0
        %v1790 = vadd.f32 %v1784, 1.0
        %v1791 = vadd.f32 %v1786, 1.0
        %v1792 = vadd.f32 %v1788, 1.0
        %v1793 = vrcp.pop %v1789
        %v1794 = vrcp.pop %v1790
        %v1795 = vrcp.pop %v1791
        %v1796 = vrcp.pop %v1792
        %v1797 = vmul.f32 %v492, %v1793
        %v1798 = vmul.f32 %v496, %v1794
        %v1799 = vmul.f32 %v502, %v1795
        %v1800 = vmul.f32 %v506, %v1796
        %v1801 = vmul.f32 %v1773, %v1797
        %v1802 = vmul.f32 %v1774, %v1798
        %v1803 = vmul.f32 %v1775, %v1799
        %v1804 = vmul.f32 %v1776, %v1800
        %v1805 = vmul.f32 %v1801, %v1801
        %v1806 = vmul.f32 %v1802, %v1802
        %v1807 = vmul.f32 %v1803, %v1803
        %v1808 = vmul.f32 %v1804, %v1804
        %1809 = vadd.xlane.f32.xlu0 %v1805
        %v1810 = vpop.xlane.xlu0 %1809
        %1811 = vadd.xlane.f32.xlu0 %v1806
        %v1812 = vpop.xlane.xlu0 %1811
        %1813 = vadd.xlane.f32.xlu0 %v1807
        %v1814 = vpop.xlane.xlu0 %1813
        %1815 = vadd.xlane.f32.xlu0 %v1808
        %v1816 = vpop.xlane.xlu0 %1815
        %v1817 = vrcp.pop 128.0
        %v1818 = vmul.f32 %v1810, %v1817
        %v1819 = vmul.f32 %v1812, %v1817
        %v1820 = vmul.f32 %v1814, %v1817
        %v1821 = vmul.f32 %v1816, %v1817
        %v1822 = vadd.f32 %v1818, 1e-05
        %v1823 = vadd.f32 %v1819, 1e-05
        %v1824 = vadd.f32 %v1820, 1e-05
        %v1825 = vadd.f32 %v1821, 1e-05
        %v1826 = vrsqrt.pop %v1822
        %v1827 = vrsqrt.pop %v1823
        %v1828 = vrsqrt.pop %v1824
        %v1829 = vrsqrt.pop %v1825
        %v1830 = vmul.f32 %v1801, %v1826
        %v1831 = vmul.f32 %v1802, %v1827
        %v1832 = vmul.f32 %v1803, %v1828
        %v1833 = vmul.f32 %v1804, %v1829
        %v1834 = vld [vmem:[%s5] sm:$0x1]
        %v1836 = vlaneseq
        %v1837 = vshrl.u32 %v1836, 7
        %v1838 = vsub.s32 0, %v1837
        %v1839 = vrot.slane %v1834, %v1838
        %v1841 = vmul.f32 %v1830, %v1839
        %v1842 = vmul.f32 %v1831, %v1839
        %v1843 = vmul.f32 %v1832, %v1839
        %v1844 = vmul.f32 %v1833, %v1839
        %v1845 = vpack.c.bf16 %v1842, %v1841
        %v1846 = vpack.c.bf16 %v1844, %v1843
        %v1847 = vld [vmem:[%s3] sm:$0xf]
        %v1848 = vld [vmem:[%s3 + $0x4] sm:$0xf]
        %v1849 = vld [vmem:[%s3 + $0x8] sm:$0xf]
        %v1850 = vld [vmem:[%s3 + $0xc] sm:$0xf]
        %v1851 = vld [vmem:[%s3 + $0x10] sm:$0xf]
        %v1852 = vld [vmem:[%s3 + $0x14] sm:$0xf]
        %v1853 = vld [vmem:[%s3 + $0x18] sm:$0xf]
        %v1854 = vld [vmem:[%s3 + $0x1c] sm:$0xf]
        %v1855 = vld [vmem:[%s3 + $0x20] sm:$0xf]
        %v1856 = vld [vmem:[%s3 + $0x24] sm:$0xf]
        %v1857 = vld [vmem:[%s3 + $0x28] sm:$0xf]
        %v1858 = vld [vmem:[%s3 + $0x2c] sm:$0xf]
        %v1859 = vld [vmem:[%s3 + $0x30] sm:$0xf]
        %v1860 = vld [vmem:[%s3 + $0x34] sm:$0xf]
        %v1861 = vld [vmem:[%s3 + $0x38] sm:$0xf]
        %v1862 = vld [vmem:[%s3 + $0x3c] sm:$0xf]
        %v1879 = vunpack.c.l.b16 %v1847
        %v1880 = vunpack.c.l.b16 %v1848
        %v1881 = vunpack.c.l.b16 %v1849
        %v1882 = vunpack.c.l.b16 %v1850
        %v1883 = vunpack.c.l.b16 %v1851
        %v1884 = vunpack.c.l.b16 %v1852
        %v1885 = vunpack.c.l.b16 %v1853
        %v1886 = vunpack.c.l.b16 %v1854
        %v1887 = vunpack.c.l.b16 %v1855
        %v1888 = vunpack.c.l.b16 %v1856
        %v1889 = vunpack.c.l.b16 %v1857
        %v1890 = vunpack.c.l.b16 %v1858
        %v1891 = vunpack.c.l.b16 %v1859
        %v1892 = vunpack.c.l.b16 %v1860
        %v1893 = vunpack.c.l.b16 %v1861
        %v1894 = vunpack.c.l.b16 %v1862
        %v1895 = vpack.c.b16 %v1880, %v1879
        %v1896 = vpack.c.b16 %v1882, %v1881
        %v1897 = vpack.c.b16 %v1884, %v1883
        %v1898 = vpack.c.b16 %v1886, %v1885
        %v1899 = vpack.c.b16 %v1888, %v1887
        %v1900 = vpack.c.b16 %v1890, %v1889
        %v1901 = vpack.c.b16 %v1892, %v1891
        %v1902 = vpack.c.b16 %v1894, %v1893
        %1911 = vmatprep.subr.bf16.mxu0 0
        %1912 = vmatpush1.bf16.msra.mxu0 %v1895
        %1913 = vmatprep.subr.bf16.mxu0 0
        %1914 = vmatpush1.bf16.msra.mxu0 %v1896
        %1915 = vmatprep.subr.bf16.mxu0 0
        %1916 = vmatpush1.bf16.msra.mxu0 %v1897
        %1917 = vmatprep.subr.bf16.mxu0 0
        %1918 = vmatpush1.bf16.msra.mxu0 %v1898
        %1919 = vmatprep.subr.bf16.mxu0 0
        %1920 = vmatpush1.bf16.msra.mxu0 %v1899
        %1921 = vmatprep.subr.bf16.mxu0 0
        %1922 = vmatpush1.bf16.msra.mxu0 %v1900
        %1923 = vmatprep.subr.bf16.mxu0 0
        %1924 = vmatpush1.bf16.msra.mxu0 %v1901
        %1925 = vmatprep.subr.bf16.mxu0 0
        %1926 = vmatpush1.bf16.msra.mxu0 %v1902
        %1927 = vmatprep.subr.bf16.mxu0 0
        %1928 = vmatpush1.bf16.msra.mxu0 0
        %1929 = vmatprep.subr.bf16.mxu0 0
        %1930 = vmatpush1.bf16.msra.mxu0 0
        %1931 = vmatprep.subr.bf16.mxu0 0
        %1932 = vmatpush1.bf16.msra.mxu0 0
        %1933 = vmatprep.subr.bf16.mxu0 0
        %1934 = vmatpush1.bf16.msra.mxu0 0
        %1935 = vmatprep.subr.bf16.mxu0 0
        %1936 = vmatpush1.bf16.msra.mxu0 0
        %1937 = vmatprep.subr.bf16.mxu0 0
        %1938 = vmatpush1.bf16.msra.mxu0 0
        %1939 = vmatprep.subr.bf16.mxu0 0
        %1940 = vmatpush1.bf16.msra.mxu0 0
        %1941 = vmatprep.subr.bf16.mxu0 0
        %1942 = vmatpush1.bf16.msra.mxu0 0
        %1943 = vmatprep.mubr.bf16.mxu0 0
        %1944 = vmatmul.mubr.bf16.gmra.mrb[0].mxu0 %v1845
        %v1945 = vpop.f32.mrb[0].mxu0
        %v1946 = vadd.f32 0.0, %v1945
        %v1947 = vpop.f32.mrb[0].mxu0
        %v1948 = vpop.f32.mrb[0].mxu0
        %v1949 = vadd.f32 0.0, %v1948
        %v1950 = vpop.f32.mrb[0].mxu0
        %1951 = vmatprep.mubr.bf16.mxu0 0
        %1952 = vmatmul.mubr.bf16.gmra.mrb[0].mxu0 %v1846
        %v1953 = vpop.f32.mrb[0].mxu0
        %v1954 = vadd.f32 0.0, %v1953
        %v1955 = vpop.f32.mrb[0].mxu0
        %v1956 = vpop.f32.mrb[0].mxu0
        %v1957 = vadd.f32 0.0, %v1956
        %v1958 = vpop.f32.mrb[0].mxu0
        %1959 = vdwg.mxu0
        %v1960 = vadd.f32 %v352, %v1946
        %v1961 = vadd.f32 %v353, %v1949
        %v1962 = vadd.f32 %v354, %v1954
        %v1963 = vadd.f32 %v355, %v1957
        %1964 = vst.msk [vmem:[%s343] sm:$0xff] %vm360, %v1960
        %1965 = vst.msk [vmem:[%s343 + $0x8] sm:$0xff] %vm360, %v1961
        %1966 = vst.msk [vmem:[%s343 + $0x10] sm:$0xff] %vm360, %v1962
        %1967 = vst.msk [vmem:[%s343 + $0x18] sm:$0xff] %vm360, %v1963
        %s1968 = sand.u32 %s206, 1
        %s1969 = scalar_lea.sflag [#allocation5], %s1968
        %s1970 = sand.u32 %s206, 1
        %s1971 = smul.addr %s1970, 32
        %s1972 = scalar_lea.vmem [#allocation10], %s1971
        // Predicated region
        $region65: #{tpu_custom_call.1} parent=51 // pred_check
          %p1973 = pneg %p216
        $region66: #{tpu_custom_call.1} parent=51 // pred_check_branch
          %1975 = sbr.rel (%p1973) target = $region68
        $region67: #{tpu_custom_call.1} parent=51 // pred_region
          %s1976 = smul.u32 4, %s25
          %s1978 = ssub.s32 512, 512
          %1979 = vsyncadd %s1969, %s1978
          %s1980 = smul.addr %s1976, 128
          %s1981 = scalar_lea.hbm %s8, %s1980
          %s1982 = sshll.u32 %s1972, 4
          %s1983 = int_to_ptr.vmem [resolvable:$true] %s1982
          %1988 = dma.vmem_to_hbm [thread:$0]  %s1983, 512, %s1981, %s1969, 128, 128, 8
        $region68: #{tpu_custom_call.1} parent=51 // pred_fallthru
          _
      $region52: #{tpu_custom_call.1} parent=5 // pred_fallthru
        _
      %p1989 = scmp.le.s32.totalorder 2, %s20
      // Predicated region
      $region69: #{tpu_custom_call.1} parent=5 // pred_check
        %p1990 = pneg %p1989
      $region70: #{tpu_custom_call.1} parent=5 // pred_check_branch
        %1992 = sbr.rel (%p1990) target = $region72
      $region71: #{tpu_custom_call.1} parent=5 // pred_region
        %s1993 = ssub.s32 %s20, 2
        // Predicated region
        $region73: #{tpu_custom_call.1} parent=71 // pred_check
          %p1994 = pneg %p222
        $region74: #{tpu_custom_call.1} parent=71 // pred_check_branch
          %1996 = sbr.rel (%p1994) target = $region76
        $region75: #{tpu_custom_call.1} parent=71 // pred_region
          %s1997 = sand.u32 %s207, 1
          %s1998 = scalar_lea.sflag [#allocation5], %s1997
          %s1999 = sand.u32 %s207, 1
          %s2000 = smul.addr %s1999, 32
          %s2001 = scalar_lea.vmem [#allocation10], %s2000
          %2002 = dma.done %s1998, 512
        $region76: #{tpu_custom_call.1} parent=71 // pred_fallthru
          _
      $region72: #{tpu_custom_call.1} parent=5 // pred_fallthru
        _
    $region6: #{tpu_custom_call.1} parent=1 // loop_footer
      %s24 = sadd.s32 1, %s20
    $region7: #{tpu_custom_call.1} parent=1 // loop_footer_branch
      %19 = sbr.rel target = $region3
    $region8: #{tpu_custom_call.1} parent=1 // loop_exit
      _
    %2003 = vsyncpa [#allocation4], 1
    %s2004 = scalar_lea.sflag [#allocation4], 1
    %2005 = vsyncpa %s2004, 1
    %2006 = vsyncpa [#allocation8], 1
    %2007 = vsyncpa [#allocation5], 1
    %s2008 = scalar_lea.sflag [#allocation5], 1
    %2009 = vsyncpa %s2008, 1
    %2010 = vsyncpa [#allocation6], 1
    %s2011 = scalar_lea.sflag [#allocation6], 1
    %2012 = vsyncpa %s2011, 1

</llo_original>
